<compile_context>
chip_gen: v5e
topology: v5e:2x2
jax: 0.10.0
libtpu: 0.0.40
codegen_flags: <defaults>
</compile_context>

<pallas_src>
import functools
import math

import jax
import jax.numpy as jnp
from jax.experimental import pallas as pl
from jax.experimental.pallas import tpu as pltpu

LANE = 128  # padded width of hidden / output feature dims (one full vreg lane row)


def _round_up(x, m):
    return (x + m - 1) // m * m


def _vmem_limit(est_bytes):
    # v5e scoped default is 16 MiB -> raise to at least 32 MiB; stay under v7x's 64 MiB
    # physical VMEM with headroom for compiler-internal scratch.
    return int(min(max(2 * est_bytes, 32 * 1024 * 1024), 56 * 1024 * 1024))


def _choose_tile(n):
    """Largest tile in {512, 256, 128} that still leaves >= 2 row tiles (v7x megacore)."""
    for t in (512, 256, 128):
        if pl.cdiv(n, t) >= 2:
            return t
    return 128


# ---------------------------------------------------------------------------
# Kernel 1: projection  XW = X @ W   (W fully resident, no reduction grid axis)
# ---------------------------------------------------------------------------
def _project_kernel(x_ref, w_ref, o_ref):
    o_ref[...] = jnp.dot(x_ref[...], w_ref[...],
                         preferred_element_type=jnp.float32).astype(o_ref.dtype)


def _project(x, w, *, tm, out_dtype):
    n, f = x.shape
    c = w.shape[1]  # == LANE
    assert n % tm == 0
    est = 2 * tm * f * 2 + 2 * f * c * 2 + 2 * tm * c * 2
    return pl.pallas_call(
        _project_kernel,
        out_shape=jax.ShapeDtypeStruct((n, c), out_dtype),
        grid_spec=pltpu.PrefetchScalarGridSpec(
            num_scalar_prefetch=0,
            grid=(n // tm,),
            in_specs=[
                pl.BlockSpec((tm, f), lambda i: (i, 0)),   # X row tile (full F, lane-dense)
                pl.BlockSpec((f, c), lambda i: (0, 0)),    # W resident (fetched once)
            ],
            out_specs=pl.BlockSpec((tm, c), lambda i: (i, 0)),
        ),
        compiler_params=pltpu.CompilerParams(
            dimension_semantics=("parallel",),
            vmem_limit_bytes=_vmem_limit(est)),
    )(x, w)


# ---------------------------------------------------------------------------
# Kernel 2: aggregation  out = epilogue(A_hat @ XW + deg * bias)
#   epilogue: optional ReLU, optional fused next-layer projection (@ W_next).
#   XW slab is VMEM-resident (constant index_map); A_hat tiles stream over k.
# ---------------------------------------------------------------------------
def _agg_body(a_ref, xw_ref, deg_ref, b_ref, wn_ref, o_ref, acc_ref, *, relu, tk):
    k = pl.program_id(1)

    @pl.when(k == 0)
    def _():
        # Fold deg * bias into the accumulator init (bias added once per in-edge message).
        acc_ref[...] = deg_ref[...] * b_ref[...]

    start = pl.multiple_of(k * tk, tk)
    acc_ref[...] += jnp.dot(a_ref[...], xw_ref[pl.ds(start, tk), :],
                            preferred_element_type=jnp.float32)

    @pl.when(k == pl.num_programs(1) - 1)
    def _():
        z = acc_ref[...]
        if relu:
            z = jnp.maximum(z, 0.0)
        if wn_ref is not None:
            # Fused next-layer projection: (A_hat @ H) @ W == A_hat @ (H @ W).
            z = jnp.dot(z.astype(wn_ref.dtype), wn_ref[...],
                        preferred_element_type=jnp.float32)
        o_ref[...] = z.astype(o_ref.dtype)


def _aggregate(a_hat, xw, deg, bias, *, relu, w_next, out_dtype, tm, tk):
    n_pad = a_hat.shape[0]
    c = xw.shape[1]  # == LANE
    assert n_pad % tm == 0 and n_pad % tk == 0
    fuse = w_next is not None

    if fuse:
        def kernel(a_ref, xw_ref, deg_ref, b_ref, wn_ref, o_ref, acc_ref):
            _agg_body(a_ref, xw_ref, deg_ref, b_ref, wn_ref, o_ref, acc_ref,
                      relu=relu, tk=tk)
    else:
        def kernel(a_ref, xw_ref, deg_ref, b_ref, o_ref, acc_ref):
            _agg_body(a_ref, xw_ref, deg_ref, b_ref, None, o_ref, acc_ref,
                      relu=relu, tk=tk)

    # NOTE: if xprof ever shows exposed DMA on the A_hat stream, add
    # pipeline_mode=pl.Buffered(3) to this first BlockSpec only.
    in_specs = [
        pl.BlockSpec((tm, tk), lambda i, k: (i, k)),      # A_hat tile stream (bf16)
        pl.BlockSpec((n_pad, c), lambda i, k: (0, 0)),    # XW resident slab (fetched once)
        pl.BlockSpec((tm, 1), lambda i, k: (i, 0)),       # in-degrees (f32)
        pl.BlockSpec((1, c), lambda i, k: (0, 0)),        # bias row (padded to 128 lanes)
    ]
    args = [a_hat, xw, deg, bias]
    if fuse:
        in_specs.append(pl.BlockSpec((c, c), lambda i, k: (0, 0)))  # W_next resident
        args.append(w_next)

    out_bytes = jnp.dtype(out_dtype).itemsize
    est = (2 * tm * tk * 2 + 2 * n_pad * c * 2 + 2 * tm * 4 + 2 * c * 4
           + (2 * c * c * 2 if fuse else 0) + tm * c * 4 + 2 * tm * c * out_bytes)

    return pl.pallas_call(
        kernel,
        out_shape=jax.ShapeDtypeStruct((n_pad, c), out_dtype),
        grid_spec=pltpu.PrefetchScalarGridSpec(
            num_scalar_prefetch=0,
            grid=(n_pad // tm, n_pad // tk),              # reduction axis last
            in_specs=in_specs,
            out_specs=pl.BlockSpec((tm, c), lambda i, k: (i, 0)),  # lane-dense output
            scratch_shapes=[pltpu.VMEM((tm, c), jnp.float32)],
        ),
        compiler_params=pltpu.CompilerParams(
            dimension_semantics=("parallel", "arbitrary"),
            vmem_limit_bytes=_vmem_limit(est)),
    )(*args)


# ---------------------------------------------------------------------------
# Graph prep (runs ONCE, outside the per-step forward): pad + cast A_hat / deg.
# ---------------------------------------------------------------------------
def prepare_graph(a_hat, deg, n_pad):
    n = a_hat.shape[0]
    a_p = jnp.pad(a_hat, ((0, n_pad - n), (0, n_pad - n))).astype(jnp.bfloat16)
    deg_p = jnp.pad(deg, ((0, n_pad - n), (0, 0))).astype(jnp.float32)
    return a_p, deg_p


# ---------------------------------------------------------------------------
# Full 2-layer GCN forward: 3 pallas_calls (project, aggregate+relu+W2, aggregate)
# ---------------------------------------------------------------------------
@functools.partial(jax.jit, static_argnames=("tm", "tk"))
def gcn_forward(a_hat_p, deg_p, x, w1, b1, w2, b2, *, tm, tk):
    n, f = x.shape
    n_pad = a_hat_p.shape[0]
    hid = w1.shape[1]
    out_dim = w2.shape[1]
    assert n_pad % tm == 0 and n_pad % tk == 0 and n_pad >= n

    # Projection's F padding is decoupled from the aggregation tile size (always 128).
    f_pad = _round_up(f, LANE)

    x_p = jnp.pad(x, ((0, n_pad - n), (0, f_pad - f))).astype(jnp.bfloat16)
    w1_p = jnp.pad(w1, ((0, f_pad - f), (0, LANE - hid))).astype(jnp.bfloat16)
    w2_p = jnp.pad(w2, ((0, LANE - hid), (0, LANE - out_dim))).astype(jnp.bfloat16)
    b1_p = jnp.pad(b1, ((0, 0), (0, LANE - hid))).astype(jnp.float32)
    b2_p = jnp.pad(b2, ((0, 0), (0, LANE - out_dim))).astype(jnp.float32)

    # --- layer 1 projection: XW1 = X @ W1 ---
    xw1 = _project(x_p, w1_p, tm=tm, out_dtype=jnp.bfloat16)

    # --- layer 1 aggregation with fused ReLU + W2 projection epilogue:
    #     XW2 = relu(A_hat @ XW1 + deg * b1) @ W2 ---
    xw2 = _aggregate(a_hat_p, xw1, deg_p, b1_p, relu=True, w_next=w2_p,
                     out_dtype=jnp.bfloat16, tm=tm, tk=tk)

    # --- layer 2 aggregation: logits = A_hat @ XW2 + deg * b2 ---
    z = _aggregate(a_hat_p, xw2, deg_p, b2_p, relu=False, w_next=None,
                   out_dtype=jnp.float32, tm=tm, tk=tk)

    return z[:n, :out_dim]


def kaiming_uniform(key, shape):
    """Matches torch.nn.init.kaiming_uniform_ defaults (a=0, fan_in=shape[1])."""
    fan_in = shape[1]
    gain = math.sqrt(2.0)
    bound = gain * math.sqrt(3.0 / fan_in)
    return jax.random.uniform(key, shape, jnp.float32, -bound, bound)


if __name__ == "__main__":
    key = jax.random.PRNGKey(0)
    k_adj, k_w1, k_w2, k_x = jax.random.split(key, 4)

    # Small synthetic graph (intentionally not tile-aligned to exercise padding).
    N, F_IN, HID, OUT = 200, 100, 16, 7

    # Dense adjacency (edge u->v stored at A[v, u]); add self-loops so in-deg >= 1.
    A = jax.random.bernoulli(k_adj, p=0.1, shape=(N, N)).astype(jnp.float32)
    A = jnp.maximum(A, jnp.eye(N, dtype=jnp.float32))

    deg = jnp.sum(A, axis=1, keepdims=True)            # in-degrees, (N, 1)
    inv_sqrt_deg = 1.0 / jnp.sqrt(deg)
    A_hat = A * inv_sqrt_deg * inv_sqrt_deg.T           # A_hat[v,u] = A[v,u]/sqrt(du*dv)

    # Parameters (GraphConvolution.__init__ shapes), deterministic init.
    w1 = kaiming_uniform(k_w1, (F_IN, HID))
    b1 = jnp.zeros((1, HID), jnp.float32)
    w2 = kaiming_uniform(k_w2, (HID, OUT))
    b2 = jnp.zeros((1, OUT), jnp.float32)

    x = jax.random.normal(k_x, (N, F_IN), jnp.float32)

    # Tile selection: keep >= 2 row tiles so v7x's second TensorCore has work.
    tm = tk = _choose_tile(N)
    n_pad = _round_up(N, tm)

    # One-time graph prep (hoisted out of the forward pass).
    a_p, deg_p = prepare_graph(A_hat, deg, n_pad)

    logits = gcn_forward(a_p, deg_p, x, w1, b1, w2, b2, tm=tm, tk=tk)
    jax.block_until_ready(logits)

    # Reference with matching bf16 quantization of the MXU operands (f32 accumulation).
    a_bf = A_hat.astype(jnp.bfloat16).astype(jnp.float32)
    x_bf = x.astype(jnp.bfloat16).astype(jnp.float32)
    w1_bf = w1.astype(jnp.bfloat16).astype(jnp.float32)
    w2_bf = w2.astype(jnp.bfloat16).astype(jnp.float32)
    xw1_ref = (x_bf @ w1_bf).astype(jnp.bfloat16).astype(jnp.float32)
    h_ref = jnp.maximum(a_bf @ xw1_ref + deg * b1, 0.0)
    h_ref = h_ref.astype(jnp.bfloat16).astype(jnp.float32)
    xw2_ref = (h_ref @ w2_bf).astype(jnp.bfloat16).astype(jnp.float32)
    z_ref = a_bf @ xw2_ref + deg * b2

    assert logits.shape == (N, OUT)
    assert jnp.allclose(logits, z_ref, atol=5e-2, rtol=5e-2)

    print("KERNEL_OK")
</pallas_src>

<mosaic_0001>
module attributes {stable_mosaic.version = 11 : i64} {
  func.func @_project_kernel(%arg0: i32, %arg1: memref<128x128xbf16, #tpu.memory_space<vmem>>, %arg2: memref<128x128xbf16, #tpu.memory_space<vmem>>, %arg3: memref<128x128xbf16, #tpu.memory_space<vmem>>) attributes {dimension_semantics = [#tpu.dimension_semantics<parallel>], iteration_bounds = array<i64: 2>, scalar_prefetch = 0 : i64, scratch_operands = 0 : i64, tpu.core_type = #tpu.core_type<tc>, window_params = [{transform_indices = @transform_0, window_bounds = array<i64: 128, 128>}, {pipeline_mode = #tpu.pipeline_mode<synchronous>, transform_indices = @transform_1, window_bounds = array<i64: 128, 128>}, {transform_indices = @transform_2, window_bounds = array<i64: 128, 128>}]} {
    %c0 = arith.constant 0 : index
    %c0_0 = arith.constant 0 : index
    %0 = vector.load %arg1[%c0, %c0_0] : memref<128x128xbf16, #tpu.memory_space<vmem>>, vector<128x128xbf16>
    %c0_1 = arith.constant 0 : index
    %c0_2 = arith.constant 0 : index
    %1 = vector.load %arg2[%c0_1, %c0_2] : memref<128x128xbf16, #tpu.memory_space<vmem>>, vector<128x128xbf16>
    %cst = arith.constant dense<0.000000e+00> : vector<128x128xf32>
    %2 = tpu.matmul %0, %1, %cst {dimension_numbers = #tpu.dot_dimension_numbers<[1], [0], [0], [1], [0, 0, 1, 1], [], []>} : vector<128x128xbf16>, vector<128x128xbf16>, vector<128x128xf32> -> vector<128x128xf32>
    %3 = arith.truncf %2 : vector<128x128xf32> to vector<128x128xbf16>
    %c0_3 = arith.constant 0 : index
    %c0_4 = arith.constant 0 : index
    %4 = vector.load %arg3[%c0_3, %c0_4] : memref<128x128xbf16, #tpu.memory_space<vmem>>, vector<128x128xbf16>
    tpu.vector_store %arg3[%c0_3, %c0_4], %3 {strides = array<i32>} : memref<128x128xbf16, #tpu.memory_space<vmem>>, vector<128x128xbf16>,
    return
  }
  func.func @transform_0(%arg0: i32) -> (i32, i32) {
    %c0_i32 = arith.constant 0 : i32
    %c0_i32_0 = arith.constant 0 : i32
    return %arg0, %c0_i32 : i32, i32
  }
  func.func @transform_1(%arg0: i32) -> (i32, i32) {
    %c0_i32 = arith.constant 0 : i32
    %c0_i32_0 = arith.constant 0 : i32
    %c0_i32_1 = arith.constant 0 : i32
    return %c0_i32, %c0_i32_0 : i32, i32
  }
  func.func @transform_2(%arg0: i32) -> (i32, i32) {
    %c0_i32 = arith.constant 0 : i32
    %c0_i32_0 = arith.constant 0 : i32
    return %arg0, %c0_i32 : i32, i32
  }
}

module attributes {stable_mosaic.version = 11 : i64} {
  func.func @kernel(%arg0: i32, %arg1: i32, %arg2: memref<128x128xbf16, #tpu.memory_space<vmem>>, %arg3: memref<256x128xbf16, #tpu.memory_space<vmem>>, %arg4: memref<128x1xf32, #tpu.memory_space<vmem>>, %arg5: memref<1x128xf32, #tpu.memory_space<vmem>>, %arg6: memref<128x128xf32, #tpu.memory_space<vmem>>, %arg7: memref<128x128xf32, #tpu.memory_space<vmem>>) attributes {dimension_semantics = [#tpu.dimension_semantics<parallel>, #tpu.dimension_semantics<arbitrary>], iteration_bounds = array<i64: 2, 2>, scalar_prefetch = 0 : i64, scratch_operands = 1 : i64, tpu.core_type = #tpu.core_type<tc>, window_params = [{transform_indices = @transform_0, window_bounds = array<i64: 128, 128>}, {pipeline_mode = #tpu.pipeline_mode<synchronous>, transform_indices = @transform_1, window_bounds = array<i64: 256, 128>}, {transform_indices = @transform_2, window_bounds = array<i64: 128, 1>}, {pipeline_mode = #tpu.pipeline_mode<synchronous>, transform_indices = @transform_3, window_bounds = array<i64: 1, 128>}, {transform_indices = @transform_4, window_bounds = array<i64: 128, 128>}]} {
    %c0_i32 = arith.constant 0 : i32
    %0 = arith.cmpi eq, %arg1, %c0_i32 : i32
    %1 = arith.extui %0 : i1 to i32
    %c0_i32_0 = arith.constant 0 : i32
    %2 = arith.cmpi ne, %1, %c0_i32_0 : i32
    scf.if %2 {
      %c0_8 = arith.constant 0 : index
      %c0_9 = arith.constant 0 : index
      %15 = vector.load %arg4[%c0_8, %c0_9] : memref<128x1xf32, #tpu.memory_space<vmem>>, vector<128x1xf32>
      %c0_10 = arith.constant 0 : index
      %c0_11 = arith.constant 0 : index
      %16 = vector.load %arg5[%c0_10, %c0_11] : memref<1x128xf32, #tpu.memory_space<vmem>>, vector<1x128xf32>
      %17 = vector.broadcast %15 : vector<128x1xf32> to vector<128x128xf32>
      %18 = vector.broadcast %16 : vector<1x128xf32> to vector<128x128xf32>
      %19 = arith.mulf %17, %18 : vector<128x128xf32>
      %c0_12 = arith.constant 0 : index
      %c0_13 = arith.constant 0 : index
      %20 = vector.load %arg7[%c0_12, %c0_13] : memref<128x128xf32, #tpu.memory_space<vmem>>, vector<128x128xf32>
      tpu.vector_store %arg7[%c0_12, %c0_13], %19 {strides = array<i32>} : memref<128x128xf32, #tpu.memory_space<vmem>>, vector<128x128xf32>,
    } else {
    }
    %c128_i32 = arith.constant 128 : i32
    %3 = arith.muli %arg1, %c128_i32 : i32
    %4 = tpu.assume_multiple %3, 128 : i32
    %c0 = arith.constant 0 : index
    %c0_1 = arith.constant 0 : index
    %5 = vector.load %arg7[%c0, %c0_1] : memref<128x128xf32, #tpu.memory_space<vmem>>, vector<128x128xf32>
    %c0_2 = arith.constant 0 : index
    %c0_3 = arith.constant 0 : index
    %6 = vector.load %arg2[%c0_2, %c0_3] : memref<128x128xbf16, #tpu.memory_space<vmem>>, vector<128x128xbf16>
    %7 = arith.index_cast %4 : i32 to index
    %c0_4 = arith.constant 0 : index
    %8 = vector.load %arg3[%7, %c0_4] : memref<256x128xbf16, #tpu.memory_space<vmem>>, vector<128x128xbf16>
    %cst = arith.constant dense<0.000000e+00> : vector<128x128xf32>
    %9 = tpu.matmul %6, %8, %cst {dimension_numbers = #tpu.dot_dimension_numbers<[1], [0], [0], [1], [0, 0, 1, 1], [], []>} : vector<128x128xbf16>, vector<128x128xbf16>, vector<128x128xf32> -> vector<128x128xf32>
    %10 = arith.addf %5, %9 : vector<128x128xf32>
    %c0_5 = arith.constant 0 : index
    %c0_6 = arith.constant 0 : index
    %11 = vector.load %arg7[%c0_5, %c0_6] : memref<128x128xf32, #tpu.memory_space<vmem>>, vector<128x128xf32>
    tpu.vector_store %arg7[%c0_5, %c0_6], %10 {strides = array<i32>} : memref<128x128xf32, #tpu.memory_space<vmem>>, vector<128x128xf32>,
    %c1_i32 = arith.constant 1 : i32
    %12 = arith.cmpi eq, %arg1, %c1_i32 : i32
    %13 = arith.extui %12 : i1 to i32
    %c0_i32_7 = arith.constant 0 : i32
    %14 = arith.cmpi ne, %13, %c0_i32_7 : i32
    scf.if %14 {
      %c0_8 = arith.constant 0 : index
      %c0_9 = arith.constant 0 : index
      %15 = vector.load %arg7[%c0_8, %c0_9] : memref<128x128xf32, #tpu.memory_space<vmem>>, vector<128x128xf32>
      %c0_10 = arith.constant 0 : index
      %c0_11 = arith.constant 0 : index
      %16 = vector.load %arg6[%c0_10, %c0_11] : memref<128x128xf32, #tpu.memory_space<vmem>>, vector<128x128xf32>
      tpu.vector_store %arg6[%c0_10, %c0_11], %15 {strides = array<i32>} : memref<128x128xf32, #tpu.memory_space<vmem>>, vector<128x128xf32>,
    } else {
    }
    return
  }
  func.func @transform_0(%arg0: i32, %arg1: i32) -> (i32, i32) {
    %c0_i32 = arith.constant 0 : i32
    return %arg0, %arg1 : i32, i32
  }
  func.func @transform_1(%arg0: i32, %arg1: i32) -> (i32, i32) {
    %c0_i32 = arith.constant 0 : i32
    %c0_i32_0 = arith.constant 0 : i32
    %c0_i32_1 = arith.constant 0 : i32
    return %c0_i32, %c0_i32_0 : i32, i32
  }
  func.func @transform_2(%arg0: i32, %arg1: i32) -> (i32, i32) {
    %c0_i32 = arith.constant 0 : i32
    %c0_i32_0 = arith.constant 0 : i32
    return %arg0, %c0_i32 : i32, i32
  }
  func.func @transform_3(%arg0: i32, %arg1: i32) -> (i32, i32) {
    %c0_i32 = arith.constant 0 : i32
    %c0_i32_0 = arith.constant 0 : i32
    %c0_i32_1 = arith.constant 0 : i32
    return %c0_i32, %c0_i32_0 : i32, i32
  }
  func.func @transform_4(%arg0: i32, %arg1: i32) -> (i32, i32) {
    %c0_i32 = arith.constant 0 : i32
    %c0_i32_0 = arith.constant 0 : i32
    return %arg0, %c0_i32 : i32, i32
  }
}

module attributes {stable_mosaic.version = 11 : i64} {
  func.func @kernel(%arg0: i32, %arg1: i32, %arg2: memref<128x128xbf16, #tpu.memory_space<vmem>>, %arg3: memref<256x128xbf16, #tpu.memory_space<vmem>>, %arg4: memref<128x1xf32, #tpu.memory_space<vmem>>, %arg5: memref<1x128xf32, #tpu.memory_space<vmem>>, %arg6: memref<128x128xbf16, #tpu.memory_space<vmem>>, %arg7: memref<128x128xbf16, #tpu.memory_space<vmem>>, %arg8: memref<128x128xf32, #tpu.memory_space<vmem>>) attributes {dimension_semantics = [#tpu.dimension_semantics<parallel>, #tpu.dimension_semantics<arbitrary>], iteration_bounds = array<i64: 2, 2>, scalar_prefetch = 0 : i64, scratch_operands = 1 : i64, tpu.core_type = #tpu.core_type<tc>, window_params = [{transform_indices = @transform_0, window_bounds = array<i64: 128, 128>}, {pipeline_mode = #tpu.pipeline_mode<synchronous>, transform_indices = @transform_1, window_bounds = array<i64: 256, 128>}, {transform_indices = @transform_2, window_bounds = array<i64: 128, 1>}, {pipeline_mode = #tpu.pipeline_mode<synchronous>, transform_indices = @transform_3, window_bounds = array<i64: 1, 128>}, {pipeline_mode = #tpu.pipeline_mode<synchronous>, transform_indices = @transform_4, window_bounds = array<i64: 128, 128>}, {transform_indices = @transform_5, window_bounds = array<i64: 128, 128>}]} {
    %c0_i32 = arith.constant 0 : i32
    %0 = arith.cmpi eq, %arg1, %c0_i32 : i32
    %1 = arith.extui %0 : i1 to i32
    %c0_i32_0 = arith.constant 0 : i32
    %2 = arith.cmpi ne, %1, %c0_i32_0 : i32
    scf.if %2 {
      %c0_8 = arith.constant 0 : index
      %c0_9 = arith.constant 0 : index
      %15 = vector.load %arg4[%c0_8, %c0_9] : memref<128x1xf32, #tpu.memory_space<vmem>>, vector<128x1xf32>
      %c0_10 = arith.constant 0 : index
      %c0_11 = arith.constant 0 : index
      %16 = vector.load %arg5[%c0_10, %c0_11] : memref<1x128xf32, #tpu.memory_space<vmem>>, vector<1x128xf32>
      %17 = vector.broadcast %15 : vector<128x1xf32> to vector<128x128xf32>
      %18 = vector.broadcast %16 : vector<1x128xf32> to vector<128x128xf32>
      %19 = arith.mulf %17, %18 : vector<128x128xf32>
      %c0_12 = arith.constant 0 : index
      %c0_13 = arith.constant 0 : index
      %20 = vector.load %arg8[%c0_12, %c0_13] : memref<128x128xf32, #tpu.memory_space<vmem>>, vector<128x128xf32>
      tpu.vector_store %arg8[%c0_12, %c0_13], %19 {strides = array<i32>} : memref<128x128xf32, #tpu.memory_space<vmem>>, vector<128x128xf32>,
    } else {
    }
    %c128_i32 = arith.constant 128 : i32
    %3 = arith.muli %arg1, %c128_i32 : i32
    %4 = tpu.assume_multiple %3, 128 : i32
    %c0 = arith.constant 0 : index
    %c0_1 = arith.constant 0 : index
    %5 = vector.load %arg8[%c0, %c0_1] : memref<128x128xf32, #tpu.memory_space<vmem>>, vector<128x128xf32>
    %c0_2 = arith.constant 0 : index
    %c0_3 = arith.constant 0 : index
    %6 = vector.load %arg2[%c0_2, %c0_3] : memref<128x128xbf16, #tpu.memory_space<vmem>>, vector<128x128xbf16>
    %7 = arith.index_cast %4 : i32 to index
    %c0_4 = arith.constant 0 : index
    %8 = vector.load %arg3[%7, %c0_4] : memref<256x128xbf16, #tpu.memory_space<vmem>>, vector<128x128xbf16>
    %cst = arith.constant dense<0.000000e+00> : vector<128x128xf32>
    %9 = tpu.matmul %6, %8, %cst {dimension_numbers = #tpu.dot_dimension_numbers<[1], [0], [0], [1], [0, 0, 1, 1], [], []>} : vector<128x128xbf16>, vector<128x128xbf16>, vector<128x128xf32> -> vector<128x128xf32>
    %10 = arith.addf %5, %9 : vector<128x128xf32>
    %c0_5 = arith.constant 0 : index
    %c0_6 = arith.constant 0 : index
    %11 = vector.load %arg8[%c0_5, %c0_6] : memref<128x128xf32, #tpu.memory_space<vmem>>, vector<128x128xf32>
    tpu.vector_store %arg8[%c0_5, %c0_6], %10 {strides = array<i32>} : memref<128x128xf32, #tpu.memory_space<vmem>>, vector<128x128xf32>,
    %c1_i32 = arith.constant 1 : i32
    %12 = arith.cmpi eq, %arg1, %c1_i32 : i32
    %13 = arith.extui %12 : i1 to i32
    %c0_i32_7 = arith.constant 0 : i32
    %14 = arith.cmpi ne, %13, %c0_i32_7 : i32
    scf.if %14 {
      %c0_8 = arith.constant 0 : index
      %c0_9 = arith.constant 0 : index
      %15 = vector.load %arg8[%c0_8, %c0_9] : memref<128x128xf32, #tpu.memory_space<vmem>>, vector<128x128xf32>
      %cst_10 = arith.constant 0.000000e+00 : f32
      %16 = vector.broadcast %cst_10 : f32 to vector<128x128xf32>
      %17 = arith.maximumf %15, %16 : vector<128x128xf32>
      %18 = arith.truncf %17 : vector<128x128xf32> to vector<128x128xbf16>
      %c0_11 = arith.constant 0 : index
      %c0_12 = arith.constant 0 : index
      %19 = vector.load %arg6[%c0_11, %c0_12] : memref<128x128xbf16, #tpu.memory_space<vmem>>, vector<128x128xbf16>
      %cst_13 = arith.constant dense<0.000000e+00> : vector<128x128xf32>
      %20 = tpu.matmul %18, %19, %cst_13 {dimension_numbers = #tpu.dot_dimension_numbers<[1], [0], [0], [1], [0, 0, 1, 1], [], []>} : vector<128x128xbf16>, vector<128x128xbf16>, vector<128x128xf32> -> vector<128x128xf32>
      %21 = arith.truncf %20 : vector<128x128xf32> to vector<128x128xbf16>
      %c0_14 = arith.constant 0 : index
      %c0_15 = arith.constant 0 : index
      %22 = vector.load %arg7[%c0_14, %c0_15] : memref<128x128xbf16, #tpu.memory_space<vmem>>, vector<128x128xbf16>
      tpu.vector_store %arg7[%c0_14, %c0_15], %21 {strides = array<i32>} : memref<128x128xbf16, #tpu.memory_space<vmem>>, vector<128x128xbf16>,
    } else {
    }
    return
  }
  func.func @transform_0(%arg0: i32, %arg1: i32) -> (i32, i32) {
    %c0_i32 = arith.constant 0 : i32
    return %arg0, %arg1 : i32, i32
  }
  func.func @transform_1(%arg0: i32, %arg1: i32) -> (i32, i32) {
    %c0_i32 = arith.constant 0 : i32
    %c0_i32_0 = arith.constant 0 : i32
    %c0_i32_1 = arith.constant 0 : i32
    return %c0_i32, %c0_i32_0 : i32, i32
  }
  func.func @transform_2(%arg0: i32, %arg1: i32) -> (i32, i32) {
    %c0_i32 = arith.constant 0 : i32
    %c0_i32_0 = arith.constant 0 : i32
    return %arg0, %c0_i32 : i32, i32
  }
  func.func @transform_3(%arg0: i32, %arg1: i32) -> (i32, i32) {
    %c0_i32 = arith.constant 0 : i32
    %c0_i32_0 = arith.constant 0 : i32
    %c0_i32_1 = arith.constant 0 : i32
    return %c0_i32, %c0_i32_0 : i32, i32
  }
  func.func @transform_4(%arg0: i32, %arg1: i32) -> (i32, i32) {
    %c0_i32 = arith.constant 0 : i32
    %c0_i32_0 = arith.constant 0 : i32
    %c0_i32_1 = arith.constant 0 : i32
    return %c0_i32, %c0_i32_0 : i32, i32
  }
  func.func @transform_5(%arg0: i32, %arg1: i32) -> (i32, i32) {
    %c0_i32 = arith.constant 0 : i32
    %c0_i32_0 = arith.constant 0 : i32
    return %arg0, %c0_i32 : i32, i32
  }
}

</mosaic_0001>

<llo_original>
// kernel: gcn_forward.3
$region0: #{gcn_forward.3}
  #allocation0 [shape = 'u32[]', space=smem, size = 0x4, offset = 0x4, fixed_abs, tag = 'smem constant byte address 0x4 - core index']
  #allocation1 [shape = 'u32[72,128]{1,0:T(1,128)}', space=vmem, size = 0x9000, scoped, tag = 'internal scratch']
  %s0 = inlined_call_operand.vmem [shape: bf16[256,128], index: 0, kind: input, shape index: {}]
  %s1 = inlined_call_operand.vmem [shape: bf16[128,128], index: 1, kind: input, shape index: {}]
  %s2 = inlined_call_operand.vmem [shape: bf16[256,128], index: 2, kind: output, shape index: {}]
  %s3 = sld [smem:[#allocation0]]
  $region41: #{gcn_forward.3} parent=0
    _
  %s5 = ssub.s32 1, %s3
  %s6 = scalar_select 0, %s5, %s3
  loop: start=0, step=1, limit=4
  $region2: #{gcn_forward.3} parent=0 // loop_pre_header
    _
  $region3: #{gcn_forward.3} parent=0 // loop_header
    %s8 = sphi 0, %s12
    %p9 = scmp.ge.s32.totalorder %s8, 4
    %s18 = sphi 0, %s20
    %s21 = sphi 0, %s18
    %s22 = sphi 0, %s21
    %s38 = sphi 0, %s22
    %s42 = sphi 0, %s42
    %s44 = sphi 0, %s42
    %s45 = sphi 0, %s44
    %s59 = sphi 0, %s45
    %s65 = sphi 0, %s67
    %s68 = sphi 0, %s65
    %s69 = sphi 0, %s68
    %s85 = sphi 0, %s69
  $region4: #{gcn_forward.3} parent=0 // loop_header_branch
    %11 = sbr.rel (%p9) target = $region8
  $region5: #{gcn_forward.3} parent=0 // loop_body
    %s13 = ssub.s32 %s8, 1
    %s14 = ssub.s32 %s8, 2
    %s15 = sadd.s32 %s8, 1
    %s16 = ssub.s32 %s8, %s15
    %p17 = scmp.eq.s32.totalorder %s16, 0
    %s19 = sadd.s32 %s18, 1
    %s20 = scalar_select %p17, %s18, %s19
    %p23 = pneg %p17
    %p24 = scmp.eq.s32.totalorder %s8, 1
    %p25 = por %p23, %p24
    %p26 = scmp.ne.s32.totalorder %s18, %s21
    %p27 = scmp.eq.s32.totalorder %s8, 0
    %p28 = por %p26, %p27
    %p29 = scmp.ne.s32.totalorder %s18, %s21
    %p30 = scmp.eq.s32.totalorder %s13, 1
    %p31 = por %p29, %p30
    %p32 = scmp.ne.s32.totalorder %s21, %s22
    %p33 = scmp.eq.s32.totalorder %s13, 0
    %p34 = por %p32, %p33
    %p35 = scmp.ne.s32.totalorder %s21, %s22
    %p36 = scmp.eq.s32.totalorder %s14, 1
    %p37 = por %p35, %p36
    %p39 = scmp.ne.s32.totalorder %s22, %s38
    %p40 = scmp.eq.s32.totalorder %s14, 0
    %p41 = por %p39, %p40
    %s43 = sadd.s32 %s42, 1
    %p46 = scmp.eq.s32.totalorder %s8, 1
    %p47 = scmp.ne.s32.totalorder %s42, %s44
    %p48 = scmp.eq.s32.totalorder %s8, 0
    %p49 = por %p47, %p48
    %p50 = scmp.ne.s32.totalorder %s42, %s44
    %p51 = scmp.eq.s32.totalorder %s13, 1
    %p52 = por %p50, %p51
    %p53 = scmp.ne.s32.totalorder %s44, %s45
    %p54 = scmp.eq.s32.totalorder %s13, 0
    %p55 = por %p53, %p54
    %p56 = scmp.ne.s32.totalorder %s44, %s45
    %p57 = scmp.eq.s32.totalorder %s14, 1
    %p58 = por %p56, %p57
    %p60 = scmp.ne.s32.totalorder %s45, %s59
    %p61 = scmp.eq.s32.totalorder %s14, 0
    %p62 = por %p60, %p61
    %s63 = ssub.s32 %s8, %s15
    %p64 = scmp.eq.s32.totalorder %s63, 0
    %s66 = sadd.s32 %s65, 1
    %s67 = scalar_select %p64, %s65, %s66
    %p70 = pneg %p64
    %p71 = scmp.eq.s32.totalorder %s8, 1
    %p72 = por %p70, %p71
    %p73 = scmp.ne.s32.totalorder %s65, %s68
    %p74 = scmp.eq.s32.totalorder %s8, 0
    %p75 = por %p73, %p74
    %p76 = scmp.ne.s32.totalorder %s65, %s68
    %p77 = scmp.eq.s32.totalorder %s13, 1
    %p78 = por %p76, %p77
    %p79 = scmp.ne.s32.totalorder %s68, %s69
    %p80 = scmp.eq.s32.totalorder %s13, 0
    %p81 = por %p79, %p80
    %p82 = scmp.ne.s32.totalorder %s68, %s69
    %p83 = scmp.eq.s32.totalorder %s14, 1
    %p84 = por %p82, %p83
    %p86 = scmp.ne.s32.totalorder %s69, %s85
    %p87 = scmp.eq.s32.totalorder %s14, 0
    %p88 = por %p86, %p87
    %p89 = scmp.le.s32.totalorder 1, %s8
    %p90 = scmp.lt.s32.totalorder %s8, 3
    %p91 = pnand %p89, %p90
    %p92 = pneg %p91
    // Predicated region
    $region9: #{gcn_forward.3} parent=5 // pred_check
      _
    $region10: #{gcn_forward.3} parent=5 // pred_check_branch
      %94 = sbr.rel (%p91) target = $region12
    $region11: #{gcn_forward.3} parent=5 // pred_region
      %s95 = ssub.s32 %s8, 1
      // Predicated region
      $region13: #{gcn_forward.3} parent=11 // pred_check
        %p96 = pneg %p55
      $region14: #{gcn_forward.3} parent=11 // pred_check_branch
        %98 = sbr.rel (%p96) target = $region16
      $region15: #{gcn_forward.3} parent=11 // pred_region
        _
      $region16: #{gcn_forward.3} parent=11 // pred_fallthru
        _
    $region12: #{gcn_forward.3} parent=5 // pred_fallthru
      _
    %p99 = scmp.lt.s32.totalorder %s8, 2
    // Predicated region
    $region17: #{gcn_forward.3} parent=5 // pred_check
      %p100 = pneg %p99
    $region18: #{gcn_forward.3} parent=5 // pred_check_branch
      %102 = sbr.rel (%p100) target = $region20
    $region19: #{gcn_forward.3} parent=5 // pred_region
      // Predicated region
      $region21: #{gcn_forward.3} parent=19 // pred_check
        %p103 = pneg %p28
      $region22: #{gcn_forward.3} parent=19 // pred_check_branch
        %105 = sbr.rel (%p103) target = $region24
      $region23: #{gcn_forward.3} parent=19 // pred_region
        %s106 = smul.u32 16, %s8
        %p107 = scmp.lt.s32.totalorder %s106, 31
        %s108 = scalar_select %p107, %s106, 31
        %s109 = smul.addr %s108, 4
        %s110 = scalar_lea.vmem %s0, %s109
        %s111 = smul.u32 16, %s8
      $region24: #{gcn_forward.3} parent=19 // pred_fallthru
        _
    $region20: #{gcn_forward.3} parent=5 // pred_fallthru
      _
    %p112 = scmp.le.s32.totalorder 1, %s8
    %p113 = scmp.lt.s32.totalorder %s8, 3
    %p114 = pnand %p112, %p113
    %p115 = pneg %p114
    // Predicated region
    $region25: #{gcn_forward.3} parent=5 // pred_check
      _
    $region26: #{gcn_forward.3} parent=5 // pred_check_branch
      %117 = sbr.rel (%p114) target = $region28
    $region27: #{gcn_forward.3} parent=5 // pred_region
      %s118 = ssub.s32 %s8, 1
      %s119 = smul.u32 16, %s13
      %p120 = scmp.lt.s32.totalorder %s119, 31
      %s121 = scalar_select %p120, %s119, 31
      %s122 = smul.addr %s121, 4
      %s123 = scalar_lea.vmem %s0, %s122
      %p124 = pneg %p34
      %p125 = pneg %p31
      %p126 = pneg %p55
      %p127 = pneg %p52
      %p128 = pneg %p81
      %p129 = pneg %p78
      %s130 = smul.u32 16, %s13
      %p131 = scmp.lt.s32.totalorder %s130, 31
      %s132 = scalar_select %p131, %s130, 31
      %s133 = smul.addr %s132, 4
      %s134 = scalar_lea.vmem %s2, %s133
      %s135 = smul.u32 16, %s13
      %p136 = scmp.lt.s32.totalorder %s135, 31
      %s137 = scalar_select %p136, %s135, 31
      %s138 = smul.addr %s137, 4
      %s139 = scalar_lea.vmem %s0, %s138
      %s140 = smul.u32 16, %s13
      %s141 = smul.u32 16, %s13
      %p142 = scmp.lt.s32.totalorder %s141, 31
      %s143 = scalar_select %p142, %s141, 31
      %s144 = smul.addr %s143, 4
      %s145 = scalar_lea.vmem %s2, %s144
      %s146 = smul.u32 16, %s13
      %v147 = vld [vmem:[%s139] sm:$0xf]
      %v148 = vld [vmem:[%s139 + $0x4] sm:$0xf]
      %v149 = vld [vmem:[%s139 + $0x8] sm:$0xf]
      %v150 = vld [vmem:[%s139 + $0xc] sm:$0xf]
      %v151 = vld [vmem:[%s139 + $0x10] sm:$0xf]
      %v152 = vld [vmem:[%s139 + $0x14] sm:$0xf]
      %v153 = vld [vmem:[%s139 + $0x18] sm:$0xf]
      %v154 = vld [vmem:[%s139 + $0x1c] sm:$0xf]
      %v155 = vld [vmem:[%s139 + $0x20] sm:$0xf]
      %v156 = vld [vmem:[%s139 + $0x24] sm:$0xf]
      %v157 = vld [vmem:[%s139 + $0x28] sm:$0xf]
      %v158 = vld [vmem:[%s139 + $0x2c] sm:$0xf]
      %v159 = vld [vmem:[%s139 + $0x30] sm:$0xf]
      %v160 = vld [vmem:[%s139 + $0x34] sm:$0xf]
      %v161 = vld [vmem:[%s139 + $0x38] sm:$0xf]
      %v162 = vld [vmem:[%s139 + $0x3c] sm:$0xf]
      %v163 = vld [vmem:[%s1] sm:$0xf]
      %v164 = vld [vmem:[%s1 + $0x4] sm:$0xf]
      %v165 = vld [vmem:[%s1 + $0x8] sm:$0xf]
      %v166 = vld [vmem:[%s1 + $0xc] sm:$0xf]
      %v167 = vld [vmem:[%s1 + $0x10] sm:$0xf]
      %v168 = vld [vmem:[%s1 + $0x14] sm:$0xf]
      %v169 = vld [vmem:[%s1 + $0x18] sm:$0xf]
      %v170 = vld [vmem:[%s1 + $0x1c] sm:$0xf]
      %v171 = vld [vmem:[%s1 + $0x20] sm:$0xf]
      %v172 = vld [vmem:[%s1 + $0x24] sm:$0xf]
      %v173 = vld [vmem:[%s1 + $0x28] sm:$0xf]
      %v174 = vld [vmem:[%s1 + $0x2c] sm:$0xf]
      %v175 = vld [vmem:[%s1 + $0x30] sm:$0xf]
      %v176 = vld [vmem:[%s1 + $0x34] sm:$0xf]
      %v177 = vld [vmem:[%s1 + $0x38] sm:$0xf]
      %v178 = vld [vmem:[%s1 + $0x3c] sm:$0xf]
      %v195 = vunpack.c.l.b16 %v147
      %v196 = vunpack.c.l.b16 %v148
      %v197 = vunpack.c.l.b16 %v149
      %v198 = vunpack.c.l.b16 %v150
      %v199 = vunpack.c.l.b16 %v151
      %v200 = vunpack.c.l.b16 %v152
      %v201 = vunpack.c.l.b16 %v153
      %v202 = vunpack.c.l.b16 %v154
      %v203 = vunpack.c.l.b16 %v155
      %v204 = vunpack.c.l.b16 %v156
      %v205 = vunpack.c.l.b16 %v157
      %v206 = vunpack.c.l.b16 %v158
      %v207 = vunpack.c.l.b16 %v159
      %v208 = vunpack.c.l.b16 %v160
      %v209 = vunpack.c.l.b16 %v161
      %v210 = vunpack.c.l.b16 %v162
      %v211 = vpack.c.b16 %v196, %v195
      %v212 = vpack.c.b16 %v198, %v197
      %v213 = vpack.c.b16 %v200, %v199
      %v214 = vpack.c.b16 %v202, %v201
      %v215 = vpack.c.b16 %v204, %v203
      %v216 = vpack.c.b16 %v206, %v205
      %v217 = vpack.c.b16 %v208, %v207
      %v218 = vpack.c.b16 %v210, %v209
      %v243 = vunpack.c.l.b16 %v163
      %v244 = vunpack.c.l.b16 %v164
      %v245 = vunpack.c.l.b16 %v165
      %v246 = vunpack.c.l.b16 %v166
      %v247 = vunpack.c.l.b16 %v167
      %v248 = vunpack.c.l.b16 %v168
      %v249 = vunpack.c.l.b16 %v169
      %v250 = vunpack.c.l.b16 %v170
      %v251 = vunpack.c.l.b16 %v171
      %v252 = vunpack.c.l.b16 %v172
      %v253 = vunpack.c.l.b16 %v173
      %v254 = vunpack.c.l.b16 %v174
      %v255 = vunpack.c.l.b16 %v175
      %v256 = vunpack.c.l.b16 %v176
      %v257 = vunpack.c.l.b16 %v177
      %v258 = vunpack.c.l.b16 %v178
      %v259 = vpack.c.b16 %v244, %v243
      %v260 = vpack.c.b16 %v246, %v245
      %v261 = vpack.c.b16 %v248, %v247
      %v262 = vpack.c.b16 %v250, %v249
      %v263 = vpack.c.b16 %v252, %v251
      %v264 = vpack.c.b16 %v254, %v253
      %v265 = vpack.c.b16 %v256, %v255
      %v266 = vpack.c.b16 %v258, %v257
      %275 = vmatpush.bf16.msra.mxu0 %v266
      %276 = vmatpush.bf16.msra.mxu0 %v265
      %277 = vmatpush.bf16.msra.mxu0 %v264
      %278 = vmatpush.bf16.msra.mxu0 %v263
      %279 = vmatpush.bf16.msra.mxu0 %v262
      %280 = vmatpush.bf16.msra.mxu0 %v261
      %281 = vmatpush.bf16.msra.mxu0 %v260
      %282 = vmatpush.bf16.msra.mxu0 %v259
      %283 = vmatmul.bf16.gmra.mxu0 %v211
      %v284 = vpop.f32.mrf.mxu0
      %v285 = vadd.f32 0.0, %v284
      %v286 = vpop.f32.mrf.mxu0
      %v287 = vadd.f32 0.0, %v286
      %288 = vmatmul.bf16.gmra.mxu0 %v212
      %v289 = vpop.f32.mrf.mxu0
      %v290 = vadd.f32 0.0, %v289
      %v291 = vpop.f32.mrf.mxu0
      %v292 = vadd.f32 0.0, %v291
      %293 = vmatmul.bf16.gmra.mxu0 %v213
      %v294 = vpop.f32.mrf.mxu0
      %v295 = vadd.f32 0.0, %v294
      %v296 = vpop.f32.mrf.mxu0
      %v297 = vadd.f32 0.0, %v296
      %298 = vmatmul.bf16.gmra.mxu0 %v214
      %v299 = vpop.f32.mrf.mxu0
      %v300 = vadd.f32 0.0, %v299
      %v301 = vpop.f32.mrf.mxu0
      %v302 = vadd.f32 0.0, %v301
      %303 = vmatmul.bf16.gmra.mxu0 %v215
      %v304 = vpop.f32.mrf.mxu0
      %v305 = vadd.f32 0.0, %v304
      %v306 = vpop.f32.mrf.mxu0
      %v307 = vadd.f32 0.0, %v306
      %308 = vmatmul.bf16.gmra.mxu0 %v216
      %v309 = vpop.f32.mrf.mxu0
      %v310 = vadd.f32 0.0, %v309
      %v311 = vpop.f32.mrf.mxu0
      %v312 = vadd.f32 0.0, %v311
      %313 = vmatmul.bf16.gmra.mxu0 %v217
      %v314 = vpop.f32.mrf.mxu0
      %v315 = vadd.f32 0.0, %v314
      %v316 = vpop.f32.mrf.mxu0
      %v317 = vadd.f32 0.0, %v316
      %318 = vmatmul.bf16.gmra.mxu0 %v218
      %v319 = vpop.f32.mrf.mxu0
      %v320 = vadd.f32 0.0, %v319
      %v321 = vpop.f32.mrf.mxu0
      %v322 = vadd.f32 0.0, %v321
      %323 = vdwg.mxu0
      %v324 = vpack.c.bf16 %v285, %v285
      %v325 = vpack.c.bf16 %v287, %v287
      %v326 = vpack.c.bf16 %v290, %v290
      %v327 = vpack.c.bf16 %v292, %v292
      %v328 = vpack.c.bf16 %v295, %v295
      %v329 = vpack.c.bf16 %v297, %v297
      %v330 = vpack.c.bf16 %v300, %v300
      %v331 = vpack.c.bf16 %v302, %v302
      %v332 = vpack.c.bf16 %v305, %v305
      %v333 = vpack.c.bf16 %v307, %v307
      %v334 = vpack.c.bf16 %v310, %v310
      %v335 = vpack.c.bf16 %v312, %v312
      %v336 = vpack.c.bf16 %v315, %v315
      %v337 = vpack.c.bf16 %v317, %v317
      %v338 = vpack.c.bf16 %v320, %v320
      %v339 = vpack.c.bf16 %v322, %v322
      %340 = vst [vmem:[%s145] sm:$0xf] %v324
      %341 = vst [vmem:[%s145 + $0x4] sm:$0xf] %v325
      %342 = vst [vmem:[%s145 + $0x8] sm:$0xf] %v326
      %343 = vst [vmem:[%s145 + $0xc] sm:$0xf] %v327
      %344 = vst [vmem:[%s145 + $0x10] sm:$0xf] %v328
      %345 = vst [vmem:[%s145 + $0x14] sm:$0xf] %v329
      %346 = vst [vmem:[%s145 + $0x18] sm:$0xf] %v330
      %347 = vst [vmem:[%s145 + $0x1c] sm:$0xf] %v331
      %348 = vst [vmem:[%s145 + $0x20] sm:$0xf] %v332
      %349 = vst [vmem:[%s145 + $0x24] sm:$0xf] %v333
      %350 = vst [vmem:[%s145 + $0x28] sm:$0xf] %v334
      %351 = vst [vmem:[%s145 + $0x2c] sm:$0xf] %v335
      %352 = vst [vmem:[%s145 + $0x30] sm:$0xf] %v336
      %353 = vst [vmem:[%s145 + $0x34] sm:$0xf] %v337
      %354 = vst [vmem:[%s145 + $0x38] sm:$0xf] %v338
      %355 = vst [vmem:[%s145 + $0x3c] sm:$0xf] %v339
      %s356 = smul.u32 16, %s13
      %p357 = scmp.lt.s32.totalorder %s356, 31
      %s358 = scalar_select %p357, %s356, 31
      %s359 = smul.addr %s358, 4
      %s360 = scalar_lea.vmem %s2, %s359
      // Predicated region
      $region29: #{gcn_forward.3} parent=27 // pred_check
        %p361 = pneg %p78
      $region30: #{gcn_forward.3} parent=27 // pred_check_branch
        %363 = sbr.rel (%p361) target = $region32
      $region31: #{gcn_forward.3} parent=27 // pred_region
        %s364 = smul.u32 16, %s13
      $region32: #{gcn_forward.3} parent=27 // pred_fallthru
        _
    $region28: #{gcn_forward.3} parent=5 // pred_fallthru
      _
    %p365 = scmp.le.s32.totalorder 2, %s8
    // Predicated region
    $region33: #{gcn_forward.3} parent=5 // pred_check
      %p366 = pneg %p365
    $region34: #{gcn_forward.3} parent=5 // pred_check_branch
      %368 = sbr.rel (%p366) target = $region36
    $region35: #{gcn_forward.3} parent=5 // pred_region
      %s369 = ssub.s32 %s8, 2
      // Predicated region
      $region37: #{gcn_forward.3} parent=35 // pred_check
        %p370 = pneg %p84
      $region38: #{gcn_forward.3} parent=35 // pred_check_branch
        %372 = sbr.rel (%p370) target = $region40
      $region39: #{gcn_forward.3} parent=35 // pred_region
        %s373 = smul.u32 16, %s14
        %p374 = scmp.lt.s32.totalorder %s373, 31
        %s375 = scalar_select %p374, %s373, 31
        %s376 = smul.addr %s375, 4
        %s377 = scalar_lea.vmem %s2, %s376
      $region40: #{gcn_forward.3} parent=35 // pred_fallthru
        _
    $region36: #{gcn_forward.3} parent=5 // pred_fallthru
      _
  $region6: #{gcn_forward.3} parent=0 // loop_footer
    %s12 = sadd.s32 1, %s8
  $region7: #{gcn_forward.3} parent=0 // loop_footer_branch
    %7 = sbr.rel target = $region3
  $region8: #{gcn_forward.3} parent=0 // loop_exit
    _

// kernel: gcn_forward.5
$region0: #{gcn_forward.5}
  #allocation0 [shape = 'u32[]', space=smem, size = 0x4, offset = 0x4, fixed_abs, tag = 'smem constant byte address 0x4 - core index']
  #allocation1 [shape = 'u32[72,128]{1,0:T(1,128)}', space=vmem, size = 0x9000, scoped, tag = 'internal scratch']
  #allocation2 [shape = 'f32[128,128]{1,0:T(8,128)}', space=vmem, size = 0x10000, scoped, tag = 'scratch operand']
  %s0 = inlined_call_operand.vmem [shape: bf16[256,256], index: 0, kind: input, shape index: {}]
  %s1 = inlined_call_operand.vmem [shape: bf16[256,128], index: 1, kind: input, shape index: {}]
  %s2 = inlined_call_operand.vmem [shape: f32[256,1], index: 2, kind: input, shape index: {}]
  %s3 = inlined_call_operand.vmem [shape: f32[1,128], index: 3, kind: input, shape index: {}]
  %s4 = inlined_call_operand.vmem [shape: f32[256,128], index: 4, kind: output, shape index: {}]
  %s5 = sld [smem:[#allocation0]]
  $region98: #{gcn_forward.5} parent=0
    _
  %s7 = ssub.s32 1, %s5
  %s8 = scalar_select 0, %s7, %s5
  $region1: #{gcn_forward.5} parent=0
    #allocation3 [shape = 'u8[65536]{0}', space=vmem, size = 0x10000, scoped, tag = 'input window, operand 0']
    loop: start=0, step=1, limit=6
    $region2: #{gcn_forward.5} parent=1 // loop_pre_header
      _
    $region3: #{gcn_forward.5} parent=1 // loop_header
      %s10 = sphi 0, %s14
      %p11 = scmp.ge.s32.totalorder %s10, 6
      %s17 = sphi 0, %s29
      %s18 = sphi 0, %s25
      %s19 = sphi 0, %s17
      %s20 = sphi 0, %s18
      %s21 = sphi 0, %s19
      %s22 = sphi 0, %s20
      %s34 = sphi 0, %s36
      %s37 = sphi 0, %s34
      %s38 = sphi 0, %s37
      %s54 = sphi 0, %s38
      %s58 = sphi 0, %s58
      %s60 = sphi 0, %s58
      %s61 = sphi 0, %s60
      %s75 = sphi 0, %s61
      %s81 = sphi 0, %s83
      %s84 = sphi 0, %s81
      %s85 = sphi 0, %s84
      %s101 = sphi 0, %s85
      %s105 = sphi 0, %s105
      %s107 = sphi 0, %s105
      %s108 = sphi 0, %s107
      %s122 = sphi 0, %s108
      %s128 = sphi 0, %s130
      %s131 = sphi 0, %s128
      %s132 = sphi 0, %s131
      %s148 = sphi 0, %s132
    $region4: #{gcn_forward.5} parent=1 // loop_header_branch
      %13 = sbr.rel (%p11) target = $region8
    $region5: #{gcn_forward.5} parent=1 // loop_body
      %s15 = ssub.s32 %s10, 1
      %s16 = ssub.s32 %s10, 2
      %s23 = sadd.s32 1, %s18
      %p24 = scmp.ge.s32.totalorder %s23, 2
      %s25 = scalar_select %p24, 0, %s23
      %s26 = sadd.s32 1, %s17
      %s27 = scalar_select %p24, %s26, %s17
      %p28 = scmp.ge.s32.totalorder %s27, 2
      %s29 = scalar_select %p28, 0, %s27
      %s30 = ssub.s32 %s17, %s29
      %s31 = ssub.s32 %s18, %s25
      %s32 = sor.u32 %s30, %s31
      %p33 = scmp.eq.s32.totalorder %s32, 0
      %s35 = sadd.s32 %s34, 1
      %s36 = scalar_select %p33, %s34, %s35
      %p39 = pneg %p33
      %p40 = scmp.eq.s32.totalorder %s10, 3
      %p41 = por %p39, %p40
      %p42 = scmp.ne.s32.totalorder %s34, %s37
      %p43 = scmp.eq.s32.totalorder %s10, 0
      %p44 = por %p42, %p43
      %p45 = scmp.ne.s32.totalorder %s34, %s37
      %p46 = scmp.eq.s32.totalorder %s15, 3
      %p47 = por %p45, %p46
      %p48 = scmp.ne.s32.totalorder %s37, %s38
      %p49 = scmp.eq.s32.totalorder %s15, 0
      %p50 = por %p48, %p49
      %p51 = scmp.ne.s32.totalorder %s37, %s38
      %p52 = scmp.eq.s32.totalorder %s16, 3
      %p53 = por %p51, %p52
      %p55 = scmp.ne.s32.totalorder %s38, %s54
      %p56 = scmp.eq.s32.totalorder %s16, 0
      %p57 = por %p55, %p56
      %s59 = sadd.s32 %s58, 1
      %p62 = scmp.eq.s32.totalorder %s10, 3
      %p63 = scmp.ne.s32.totalorder %s58, %s60
      %p64 = scmp.eq.s32.totalorder %s10, 0
      %p65 = por %p63, %p64
      %p66 = scmp.ne.s32.totalorder %s58, %s60
      %p67 = scmp.eq.s32.totalorder %s15, 3
      %p68 = por %p66, %p67
      %p69 = scmp.ne.s32.totalorder %s60, %s61
      %p70 = scmp.eq.s32.totalorder %s15, 0
      %p71 = por %p69, %p70
      %p72 = scmp.ne.s32.totalorder %s60, %s61
      %p73 = scmp.eq.s32.totalorder %s16, 3
      %p74 = por %p72, %p73
      %p76 = scmp.ne.s32.totalorder %s61, %s75
      %p77 = scmp.eq.s32.totalorder %s16, 0
      %p78 = por %p76, %p77
      %s79 = ssub.s32 %s17, %s29
      %p80 = scmp.eq.s32.totalorder %s79, 0
      %s82 = sadd.s32 %s81, 1
      %s83 = scalar_select %p80, %s81, %s82
      %p86 = pneg %p80
      %p87 = scmp.eq.s32.totalorder %s10, 3
      %p88 = por %p86, %p87
      %p89 = scmp.ne.s32.totalorder %s81, %s84
      %p90 = scmp.eq.s32.totalorder %s10, 0
      %p91 = por %p89, %p90
      %p92 = scmp.ne.s32.totalorder %s81, %s84
      %p93 = scmp.eq.s32.totalorder %s15, 3
      %p94 = por %p92, %p93
      %p95 = scmp.ne.s32.totalorder %s84, %s85
      %p96 = scmp.eq.s32.totalorder %s15, 0
      %p97 = por %p95, %p96
      %p98 = scmp.ne.s32.totalorder %s84, %s85
      %p99 = scmp.eq.s32.totalorder %s16, 3
      %p100 = por %p98, %p99
      %p102 = scmp.ne.s32.totalorder %s85, %s101
      %p103 = scmp.eq.s32.totalorder %s16, 0
      %p104 = por %p102, %p103
      %s106 = sadd.s32 %s105, 1
      %p109 = scmp.eq.s32.totalorder %s10, 3
      %p110 = scmp.ne.s32.totalorder %s105, %s107
      %p111 = scmp.eq.s32.totalorder %s10, 0
      %p112 = por %p110, %p111
      %p113 = scmp.ne.s32.totalorder %s105, %s107
      %p114 = scmp.eq.s32.totalorder %s15, 3
      %p115 = por %p113, %p114
      %p116 = scmp.ne.s32.totalorder %s107, %s108
      %p117 = scmp.eq.s32.totalorder %s15, 0
      %p118 = por %p116, %p117
      %p119 = scmp.ne.s32.totalorder %s107, %s108
      %p120 = scmp.eq.s32.totalorder %s16, 3
      %p121 = por %p119, %p120
      %p123 = scmp.ne.s32.totalorder %s108, %s122
      %p124 = scmp.eq.s32.totalorder %s16, 0
      %p125 = por %p123, %p124
      %s126 = ssub.s32 %s17, %s29
      %p127 = scmp.eq.s32.totalorder %s126, 0
      %s129 = sadd.s32 %s128, 1
      %s130 = scalar_select %p127, %s128, %s129
      %p133 = pneg %p127
      %p134 = scmp.eq.s32.totalorder %s10, 3
      %p135 = por %p133, %p134
      %p136 = scmp.ne.s32.totalorder %s128, %s131
      %p137 = scmp.eq.s32.totalorder %s10, 0
      %p138 = por %p136, %p137
      %p139 = scmp.ne.s32.totalorder %s128, %s131
      %p140 = scmp.eq.s32.totalorder %s15, 3
      %p141 = por %p139, %p140
      %p142 = scmp.ne.s32.totalorder %s131, %s132
      %p143 = scmp.eq.s32.totalorder %s15, 0
      %p144 = por %p142, %p143
      %p145 = scmp.ne.s32.totalorder %s131, %s132
      %p146 = scmp.eq.s32.totalorder %s16, 3
      %p147 = por %p145, %p146
      %p149 = scmp.ne.s32.totalorder %s132, %s148
      %p150 = scmp.eq.s32.totalorder %s16, 0
      %p151 = por %p149, %p150
      %p152 = scmp.le.s32.totalorder 1, %s10
      %p153 = scmp.lt.s32.totalorder %s10, 5
      %p154 = pnand %p152, %p153
      %p155 = pneg %p154
      // Predicated region
      $region9: #{gcn_forward.5} parent=5 // pred_check
        _
      $region10: #{gcn_forward.5} parent=5 // pred_check_branch
        %157 = sbr.rel (%p154) target = $region12
      $region11: #{gcn_forward.5} parent=5 // pred_region
        %s158 = ssub.s32 %s10, 1
        // Predicated region
        $region13: #{gcn_forward.5} parent=11 // pred_check
          %p159 = pneg %p71
        $region14: #{gcn_forward.5} parent=11 // pred_check_branch
          %161 = sbr.rel (%p159) target = $region16
        $region15: #{gcn_forward.5} parent=11 // pred_region
          _
        $region16: #{gcn_forward.5} parent=11 // pred_fallthru
          _
        // Predicated region
        $region17: #{gcn_forward.5} parent=11 // pred_check
          %p162 = pneg %p118
        $region18: #{gcn_forward.5} parent=11 // pred_check_branch
          %164 = sbr.rel (%p162) target = $region20
        $region19: #{gcn_forward.5} parent=11 // pred_region
          _
        $region20: #{gcn_forward.5} parent=11 // pred_fallthru
          _
      $region12: #{gcn_forward.5} parent=5 // pred_fallthru
        _
      %p165 = scmp.lt.s32.totalorder %s10, 4
      // Predicated region
      $region21: #{gcn_forward.5} parent=5 // pred_check
        %p166 = pneg %p165
      $region22: #{gcn_forward.5} parent=5 // pred_check_branch
        %168 = sbr.rel (%p166) target = $region24
      $region23: #{gcn_forward.5} parent=5 // pred_region
        // Predicated region
        $region25: #{gcn_forward.5} parent=23 // pred_check
          %p169 = pneg %p44
        $region26: #{gcn_forward.5} parent=23 // pred_check_branch
          %171 = sbr.rel (%p169) target = $region28
        $region27: #{gcn_forward.5} parent=23 // pred_region
          %s172 = sand.u32 %s34, 1
          %s173 = sand.u32 %s34, 1
          %s174 = smul.addr %s173, 64
          %s175 = scalar_lea.vmem [#allocation3], %s174
          %s176 = smul.u32 16, %s17
          %s177 = smul.addr %s176, 2
          %s178 = sadd.s32 %s18, %s177
          %s179 = smul.addr %s178, 4
          %s180 = scalar_lea.vmem %s0, %s179
          // Predicated region
          $region29: #{gcn_forward.5} parent=27 // pred_check
            _
          $region30: #{gcn_forward.5} parent=27 // pred_check_branch
            %182 = sbr.rel (0) target = $region32
          $region31: #{gcn_forward.5} parent=27 // pred_region
            // Predicated region
            $region33: #{gcn_forward.5} parent=31 // pred_check
              _
            $region34: #{gcn_forward.5} parent=31 // pred_check_branch
              %184 = sbr.rel target = $region36
            $region35: #{gcn_forward.5} parent=31 // pred_region
              // Predicated region
              $region48: #{gcn_forward.5} parent=35 // pred_check
                _
              $region49: #{gcn_forward.5} parent=35 // pred_check_branch
                %230 = sbr.rel (0) target = $region51
              $region50: #{gcn_forward.5} parent=35 // pred_region
                loop: start=0, step=1, limit=1
                $region52: #{gcn_forward.5} parent=50 // loop_pre_header
                  _
                $region53: #{gcn_forward.5} parent=50 // loop_header
                  %s232 = sphi 0, %s236
                  %p233 = scmp.ge.s32.totalorder %s232, 1
                  %s237 = sphi %s180, %s180
                  %s238 = sphi %s175, %s175
                $region54: #{gcn_forward.5} parent=50 // loop_header_branch
                  %235 = sbr.rel (%p233) target = $region58
                $region55: #{gcn_forward.5} parent=50 // loop_body
                  _
                $region56: #{gcn_forward.5} parent=50 // loop_footer
                  %s236 = sadd.s32 1, %s232
                $region57: #{gcn_forward.5} parent=50 // loop_footer_branch
                  %231 = sbr.rel target = $region53
                $region58: #{gcn_forward.5} parent=50 // loop_exit
                  _
                %s240 = ssub.s32 16, 1
                loop: start=0, step=1, limit=1
                $region59: #{gcn_forward.5} parent=50 // loop_pre_header
                  _
                $region60: #{gcn_forward.5} parent=50 // loop_header
                  %s242 = sphi 0, %s246
                  %p243 = scmp.ge.s32.totalorder %s242, 1
                  %s247 = sphi %s180, %s180
                  %s248 = sphi %s175, %s175
                $region61: #{gcn_forward.5} parent=50 // loop_header_branch
                  %245 = sbr.rel (%p243) target = $region65
                $region62: #{gcn_forward.5} parent=50 // loop_body
                  %v249 = vld [vmem:[%s247] sm:%s240]
                  %250 = vst [vmem:[%s248] sm:%s240] %v249
                  %v251 = vld [vmem:[%s247 + $0x8] sm:%s240]
                  %252 = vst [vmem:[%s248 + $0x4] sm:%s240] %v251
                  %v253 = vld [vmem:[%s247 + $0x10] sm:%s240]
                  %254 = vst [vmem:[%s248 + $0x8] sm:%s240] %v253
                  %v255 = vld [vmem:[%s247 + $0x18] sm:%s240]
                  %256 = vst [vmem:[%s248 + $0xc] sm:%s240] %v255
                  %v257 = vld [vmem:[%s247 + $0x20] sm:%s240]
                  %258 = vst [vmem:[%s248 + $0x10] sm:%s240] %v257
                  %v259 = vld [vmem:[%s247 + $0x28] sm:%s240]
                  %260 = vst [vmem:[%s248 + $0x14] sm:%s240] %v259
                  %v261 = vld [vmem:[%s247 + $0x30] sm:%s240]
                  %262 = vst [vmem:[%s248 + $0x18] sm:%s240] %v261
                  %v263 = vld [vmem:[%s247 + $0x38] sm:%s240]
                  %264 = vst [vmem:[%s248 + $0x1c] sm:%s240] %v263
                  %v265 = vld [vmem:[%s247 + $0x40] sm:%s240]
                  %266 = vst [vmem:[%s248 + $0x20] sm:%s240] %v265
                  %v267 = vld [vmem:[%s247 + $0x48] sm:%s240]
                  %268 = vst [vmem:[%s248 + $0x24] sm:%s240] %v267
                  %v269 = vld [vmem:[%s247 + $0x50] sm:%s240]
                  %270 = vst [vmem:[%s248 + $0x28] sm:%s240] %v269
                  %v271 = vld [vmem:[%s247 + $0x58] sm:%s240]
                  %272 = vst [vmem:[%s248 + $0x2c] sm:%s240] %v271
                  %v273 = vld [vmem:[%s247 + $0x60] sm:%s240]
                  %274 = vst [vmem:[%s248 + $0x30] sm:%s240] %v273
                  %v275 = vld [vmem:[%s247 + $0x68] sm:%s240]
                  %276 = vst [vmem:[%s248 + $0x34] sm:%s240] %v275
                  %v277 = vld [vmem:[%s247 + $0x70] sm:%s240]
                  %278 = vst [vmem:[%s248 + $0x38] sm:%s240] %v277
                  %v279 = vld [vmem:[%s247 + $0x78] sm:%s240]
                  %280 = vst [vmem:[%s248 + $0x3c] sm:%s240] %v279
                $region63: #{gcn_forward.5} parent=50 // loop_footer
                  %s246 = sadd.s32 1, %s242
                $region64: #{gcn_forward.5} parent=50 // loop_footer_branch
                  %241 = sbr.rel target = $region60
                $region65: #{gcn_forward.5} parent=50 // loop_exit
                  _
              $region51: #{gcn_forward.5} parent=35 // pred_fallthru
                _
            $region36: #{gcn_forward.5} parent=31 // pred_fallthru
              _
            // Predicated region
            $region37: #{gcn_forward.5} parent=31 // pred_check
              _
            $region38: #{gcn_forward.5} parent=31 // pred_check_branch
              %186 = sbr.rel (0) target = $region40
            $region39: #{gcn_forward.5} parent=31 // pred_region
              %s188 = ssub.s32 16, 1
              loop: start=0, step=1, limit=1
              $region41: #{gcn_forward.5} parent=39 // loop_pre_header
                _
              $region42: #{gcn_forward.5} parent=39 // loop_header
                %s190 = sphi 0, %s194
                %p191 = scmp.ge.s32.totalorder %s190, 1
                %s195 = sphi %s180, %s180
                %s196 = sphi %s175, %s175
              $region43: #{gcn_forward.5} parent=39 // loop_header_branch
                %193 = sbr.rel (%p191) target = $region47
              $region44: #{gcn_forward.5} parent=39 // loop_body
                %v197 = vld [vmem:[%s195] sm:%s188]
                %198 = vst [vmem:[%s196] sm:%s188] %v197
                %v199 = vld [vmem:[%s195 + $0x8] sm:%s188]
                %200 = vst [vmem:[%s196 + $0x4] sm:%s188] %v199
                %v201 = vld [vmem:[%s195 + $0x10] sm:%s188]
                %202 = vst [vmem:[%s196 + $0x8] sm:%s188] %v201
                %v203 = vld [vmem:[%s195 + $0x18] sm:%s188]
                %204 = vst [vmem:[%s196 + $0xc] sm:%s188] %v203
                %v205 = vld [vmem:[%s195 + $0x20] sm:%s188]
                %206 = vst [vmem:[%s196 + $0x10] sm:%s188] %v205
                %v207 = vld [vmem:[%s195 + $0x28] sm:%s188]
                %208 = vst [vmem:[%s196 + $0x14] sm:%s188] %v207
                %v209 = vld [vmem:[%s195 + $0x30] sm:%s188]
                %210 = vst [vmem:[%s196 + $0x18] sm:%s188] %v209
                %v211 = vld [vmem:[%s195 + $0x38] sm:%s188]
                %212 = vst [vmem:[%s196 + $0x1c] sm:%s188] %v211
                %v213 = vld [vmem:[%s195 + $0x40] sm:%s188]
                %214 = vst [vmem:[%s196 + $0x20] sm:%s188] %v213
                %v215 = vld [vmem:[%s195 + $0x48] sm:%s188]
                %216 = vst [vmem:[%s196 + $0x24] sm:%s188] %v215
                %v217 = vld [vmem:[%s195 + $0x50] sm:%s188]
                %218 = vst [vmem:[%s196 + $0x28] sm:%s188] %v217
                %v219 = vld [vmem:[%s195 + $0x58] sm:%s188]
                %220 = vst [vmem:[%s196 + $0x2c] sm:%s188] %v219
                %v221 = vld [vmem:[%s195 + $0x60] sm:%s188]
                %222 = vst [vmem:[%s196 + $0x30] sm:%s188] %v221
                %v223 = vld [vmem:[%s195 + $0x68] sm:%s188]
                %224 = vst [vmem:[%s196 + $0x34] sm:%s188] %v223
                %v225 = vld [vmem:[%s195 + $0x70] sm:%s188]
                %226 = vst [vmem:[%s196 + $0x38] sm:%s188] %v225
                %v227 = vld [vmem:[%s195 + $0x78] sm:%s188]
                %228 = vst [vmem:[%s196 + $0x3c] sm:%s188] %v227
              $region45: #{gcn_forward.5} parent=39 // loop_footer
                %s194 = sadd.s32 1, %s190
              $region46: #{gcn_forward.5} parent=39 // loop_footer_branch
                %189 = sbr.rel target = $region42
              $region47: #{gcn_forward.5} parent=39 // loop_exit
                _
            $region40: #{gcn_forward.5} parent=31 // pred_fallthru
              _
          $region32: #{gcn_forward.5} parent=27 // pred_fallthru
            _
          %281 = vnop
        $region28: #{gcn_forward.5} parent=23 // pred_fallthru
          _
        // Predicated region
        $region66: #{gcn_forward.5} parent=23 // pred_check
          %p282 = pneg %p91
        $region67: #{gcn_forward.5} parent=23 // pred_check_branch
          %284 = sbr.rel (%p282) target = $region69
        $region68: #{gcn_forward.5} parent=23 // pred_region
          %s285 = smul.u32 16, %s17
          %p286 = scmp.lt.s32.totalorder %s285, 31
          %s287 = scalar_select %p286, %s285, 31
          %s288 = smul.addr %s287, 8
          %s289 = scalar_lea.vmem %s2, %s288
          %s290 = smul.u32 16, %s17
        $region69: #{gcn_forward.5} parent=23 // pred_fallthru
          _
      $region24: #{gcn_forward.5} parent=5 // pred_fallthru
        _
      %p291 = scmp.le.s32.totalorder 1, %s10
      %p292 = scmp.lt.s32.totalorder %s10, 5
      %p293 = pnand %p291, %p292
      %p294 = pneg %p293
      // Predicated region
      $region70: #{gcn_forward.5} parent=5 // pred_check
        _
      $region71: #{gcn_forward.5} parent=5 // pred_check_branch
        %296 = sbr.rel (%p293) target = $region73
      $region72: #{gcn_forward.5} parent=5 // pred_region
        %s297 = ssub.s32 %s10, 1
        %s298 = sand.u32 %s37, 1
        %s299 = sand.u32 %s37, 1
        %s300 = smul.addr %s299, 64
        %s301 = scalar_lea.vmem [#allocation3], %s300
        // Predicated region
        $region74: #{gcn_forward.5} parent=72 // pred_check
          %p302 = pneg %p50
        $region75: #{gcn_forward.5} parent=72 // pred_check_branch
          %304 = sbr.rel (%p302) target = $region77
        $region76: #{gcn_forward.5} parent=72 // pred_region
          _
        $region77: #{gcn_forward.5} parent=72 // pred_fallthru
          _
        %s305 = sand.u32 %s37, 1
        %s306 = sand.u32 %s37, 1
        %s307 = smul.addr %s306, 64
        %s308 = scalar_lea.vmem [#allocation3], %s307
        %p309 = pneg %p50
        %p310 = pneg %p47
        %p311 = pneg %p71
        %p312 = pneg %p68
        %s313 = smul.u32 16, %s19
        %p314 = scmp.lt.s32.totalorder %s313, 31
        %s315 = scalar_select %p314, %s313, 31
        %s316 = smul.addr %s315, 8
        %s317 = scalar_lea.vmem %s2, %s316
        %p318 = pneg %p97
        %p319 = pneg %p94
        %p320 = pneg %p118
        %p321 = pneg %p115
        %p322 = pneg %p144
        %p323 = pneg %p141
        %s324 = smul.u32 16, %s19
        %p325 = scmp.lt.s32.totalorder %s324, 31
        %s326 = scalar_select %p325, %s324, 31
        %s327 = smul.addr %s326, 8
        %s328 = scalar_lea.vmem %s4, %s327
        %s329 = smul.u32 16, %s19
        %s330 = smul.u32 16, %s19
        %p331 = scmp.lt.s32.totalorder %s330, 31
        %s332 = scalar_select %p331, %s330, 31
        %s333 = smul.addr %s332, 8
        %s334 = scalar_lea.vmem %s2, %s333
        %s335 = smul.u32 16, %s19
        %s336 = smul.u32 16, %s19
        %p337 = scmp.lt.s32.totalorder %s336, 31
        %s338 = scalar_select %p337, %s336, 31
        %s339 = smul.addr %s338, 8
        %s340 = scalar_lea.vmem %s4, %s339
        %s341 = smul.u32 16, %s19
        %p342 = scmp.eq.s32.totalorder %s20, 0
        // Predicated region
        $region78: #{gcn_forward.5} parent=72 // pred_check
          %p343 = pneg %p342
        $region79: #{gcn_forward.5} parent=72 // pred_check_branch
          %345 = sbr.rel (%p343) target = $region81
        $region80: #{gcn_forward.5} parent=72 // pred_region
          %v346 = vld [vmem:[%s334] sm:$0xff]
          %v347 = vld [vmem:[%s334 + $0x8] sm:$0xff]
          %v348 = vld [vmem:[%s334 + $0x10] sm:$0xff]
          %v349 = vld [vmem:[%s334 + $0x18] sm:$0xff]
          %v350 = vld [vmem:[%s334 + $0x20] sm:$0xff]
          %v351 = vld [vmem:[%s334 + $0x28] sm:$0xff]
          %v352 = vld [vmem:[%s334 + $0x30] sm:$0xff]
          %v353 = vld [vmem:[%s334 + $0x38] sm:$0xff]
          %v354 = vld [vmem:[%s334 + $0x40] sm:$0xff]
          %v355 = vld [vmem:[%s334 + $0x48] sm:$0xff]
          %v356 = vld [vmem:[%s334 + $0x50] sm:$0xff]
          %v357 = vld [vmem:[%s334 + $0x58] sm:$0xff]
          %v358 = vld [vmem:[%s334 + $0x60] sm:$0xff]
          %v359 = vld [vmem:[%s334 + $0x68] sm:$0xff]
          %v360 = vld [vmem:[%s334 + $0x70] sm:$0xff]
          %v361 = vld [vmem:[%s334 + $0x78] sm:$0xff]
          %v362 = vld [vmem:[%s3] sm:$0x1]
          %364 = vset.pattern.permute.xlu0 0
          %365 = vperm.xlu0 %364, %v346
          %v366 = vpop.permute.xlu0 %365
          %369 = vset.pattern.permute.xlu0 0
          %370 = vperm.xlu0 %369, %v347
          %v371 = vpop.permute.xlu0 %370
          %374 = vset.pattern.permute.xlu0 0
          %375 = vperm.xlu0 %374, %v348
          %v376 = vpop.permute.xlu0 %375
          %379 = vset.pattern.permute.xlu0 0
          %380 = vperm.xlu0 %379, %v349
          %v381 = vpop.permute.xlu0 %380
          %384 = vset.pattern.permute.xlu0 0
          %385 = vperm.xlu0 %384, %v350
          %v386 = vpop.permute.xlu0 %385
          %389 = vset.pattern.permute.xlu0 0
          %390 = vperm.xlu0 %389, %v351
          %v391 = vpop.permute.xlu0 %390
          %394 = vset.pattern.permute.xlu0 0
          %395 = vperm.xlu0 %394, %v352
          %v396 = vpop.permute.xlu0 %395
          %399 = vset.pattern.permute.xlu0 0
          %400 = vperm.xlu0 %399, %v353
          %v401 = vpop.permute.xlu0 %400
          %404 = vset.pattern.permute.xlu0 0
          %405 = vperm.xlu0 %404, %v354
          %v406 = vpop.permute.xlu0 %405
          %409 = vset.pattern.permute.xlu0 0
          %410 = vperm.xlu0 %409, %v355
          %v411 = vpop.permute.xlu0 %410
          %414 = vset.pattern.permute.xlu0 0
          %415 = vperm.xlu0 %414, %v356
          %v416 = vpop.permute.xlu0 %415
          %419 = vset.pattern.permute.xlu0 0
          %420 = vperm.xlu0 %419, %v357
          %v421 = vpop.permute.xlu0 %420
          %424 = vset.pattern.permute.xlu0 0
          %425 = vperm.xlu0 %424, %v358
          %v426 = vpop.permute.xlu0 %425
          %429 = vset.pattern.permute.xlu0 0
          %430 = vperm.xlu0 %429, %v359
          %v431 = vpop.permute.xlu0 %430
          %434 = vset.pattern.permute.xlu0 0
          %435 = vperm.xlu0 %434, %v360
          %v436 = vpop.permute.xlu0 %435
          %439 = vset.pattern.permute.xlu0 0
          %440 = vperm.xlu0 %439, %v361
          %v441 = vpop.permute.xlu0 %440
          %v444 = vperm.slane %v362, 0
          %v446 = vmul.f32 %v366, %v444
          %v447 = vmul.f32 %v371, %v444
          %v448 = vmul.f32 %v376, %v444
          %v449 = vmul.f32 %v381, %v444
          %v450 = vmul.f32 %v386, %v444
          %v451 = vmul.f32 %v391, %v444
          %v452 = vmul.f32 %v396, %v444
          %v453 = vmul.f32 %v401, %v444
          %v454 = vmul.f32 %v406, %v444
          %v455 = vmul.f32 %v411, %v444
          %v456 = vmul.f32 %v416, %v444
          %v457 = vmul.f32 %v421, %v444
          %v458 = vmul.f32 %v426, %v444
          %v459 = vmul.f32 %v431, %v444
          %v460 = vmul.f32 %v436, %v444
          %v461 = vmul.f32 %v441, %v444
          %462 = vst [vmem:[#allocation2] sm:$0xff] %v446
          %463 = vst [vmem:[#allocation2 + $0x8] sm:$0xff] %v447
          %464 = vst [vmem:[#allocation2 + $0x10] sm:$0xff] %v448
          %465 = vst [vmem:[#allocation2 + $0x18] sm:$0xff] %v449
          %466 = vst [vmem:[#allocation2 + $0x20] sm:$0xff] %v450
          %467 = vst [vmem:[#allocation2 + $0x28] sm:$0xff] %v451
          %468 = vst [vmem:[#allocation2 + $0x30] sm:$0xff] %v452
          %469 = vst [vmem:[#allocation2 + $0x38] sm:$0xff] %v453
          %470 = vst [vmem:[#allocation2 + $0x40] sm:$0xff] %v454
          %471 = vst [vmem:[#allocation2 + $0x48] sm:$0xff] %v455
          %472 = vst [vmem:[#allocation2 + $0x50] sm:$0xff] %v456
          %473 = vst [vmem:[#allocation2 + $0x58] sm:$0xff] %v457
          %474 = vst [vmem:[#allocation2 + $0x60] sm:$0xff] %v458
          %475 = vst [vmem:[#allocation2 + $0x68] sm:$0xff] %v459
          %476 = vst [vmem:[#allocation2 + $0x70] sm:$0xff] %v460
          %477 = vst [vmem:[#allocation2 + $0x78] sm:$0xff] %v461
        $region81: #{gcn_forward.5} parent=72 // pred_fallthru
          _
        %s478 = smul.u32 %s20, 128
        %v479 = vld [vmem:[#allocation2] sm:$0xff]
        %v480 = vld [vmem:[#allocation2 + $0x8] sm:$0xff]
        %v481 = vld [vmem:[#allocation2 + $0x10] sm:$0xff]
        %v482 = vld [vmem:[#allocation2 + $0x18] sm:$0xff]
        %v483 = vld [vmem:[#allocation2 + $0x20] sm:$0xff]
        %v484 = vld [vmem:[#allocation2 + $0x28] sm:$0xff]
        %v485 = vld [vmem:[#allocation2 + $0x30] sm:$0xff]
        %v486 = vld [vmem:[#allocation2 + $0x38] sm:$0xff]
        %v487 = vld [vmem:[#allocation2 + $0x40] sm:$0xff]
        %v488 = vld [vmem:[#allocation2 + $0x48] sm:$0xff]
        %v489 = vld [vmem:[#allocation2 + $0x50] sm:$0xff]
        %v490 = vld [vmem:[#allocation2 + $0x58] sm:$0xff]
        %v491 = vld [vmem:[#allocation2 + $0x60] sm:$0xff]
        %v492 = vld [vmem:[#allocation2 + $0x68] sm:$0xff]
        %v493 = vld [vmem:[#allocation2 + $0x70] sm:$0xff]
        %v494 = vld [vmem:[#allocation2 + $0x78] sm:$0xff]
        %v495 = vld [vmem:[%s301] sm:$0xf]
        %v496 = vld [vmem:[%s301 + $0x4] sm:$0xf]
        %v497 = vld [vmem:[%s301 + $0x8] sm:$0xf]
        %v498 = vld [vmem:[%s301 + $0xc] sm:$0xf]
        %v499 = vld [vmem:[%s301 + $0x10] sm:$0xf]
        %v500 = vld [vmem:[%s301 + $0x14] sm:$0xf]
        %v501 = vld [vmem:[%s301 + $0x18] sm:$0xf]
        %v502 = vld [vmem:[%s301 + $0x1c] sm:$0xf]
        %v503 = vld [vmem:[%s301 + $0x20] sm:$0xf]
        %v504 = vld [vmem:[%s301 + $0x24] sm:$0xf]
        %v505 = vld [vmem:[%s301 + $0x28] sm:$0xf]
        %v506 = vld [vmem:[%s301 + $0x2c] sm:$0xf]
        %v507 = vld [vmem:[%s301 + $0x30] sm:$0xf]
        %v508 = vld [vmem:[%s301 + $0x34] sm:$0xf]
        %v509 = vld [vmem:[%s301 + $0x38] sm:$0xf]
        %v510 = vld [vmem:[%s301 + $0x3c] sm:$0xf]
        %s511 = sshra.s32 %s478, 3
        %s512 = sand.u32 %s478, 7
        %s513 = smul.addr %s511, 4
        %s514 = scalar_lea.vmem %s1, %s513
        %v515 = vld [vmem:[%s514] sm:$0xf]
        %v516 = vld [vmem:[%s514 + $0x4] sm:$0xf]
        %v517 = vld [vmem:[%s514 + $0x8] sm:$0xf]
        %v518 = vld [vmem:[%s514 + $0xc] sm:$0xf]
        %v519 = vld [vmem:[%s514 + $0x10] sm:$0xf]
        %v520 = vld [vmem:[%s514 + $0x14] sm:$0xf]
        %v521 = vld [vmem:[%s514 + $0x18] sm:$0xf]
        %v522 = vld [vmem:[%s514 + $0x1c] sm:$0xf]
        %v523 = vld [vmem:[%s514 + $0x20] sm:$0xf]
        %v524 = vld [vmem:[%s514 + $0x24] sm:$0xf]
        %v525 = vld [vmem:[%s514 + $0x28] sm:$0xf]
        %v526 = vld [vmem:[%s514 + $0x2c] sm:$0xf]
        %v527 = vld [vmem:[%s514 + $0x30] sm:$0xf]
        %v528 = vld [vmem:[%s514 + $0x34] sm:$0xf]
        %v529 = vld [vmem:[%s514 + $0x38] sm:$0xf]
        %v530 = vld [vmem:[%s514 + $0x3c] sm:$0xf]
        %v547 = vunpack.c.l.b16 %v495
        %v548 = vunpack.c.l.b16 %v496
        %v549 = vunpack.c.l.b16 %v497
        %v550 = vunpack.c.l.b16 %v498
        %v551 = vunpack.c.l.b16 %v499
        %v552 = vunpack.c.l.b16 %v500
        %v553 = vunpack.c.l.b16 %v501
        %v554 = vunpack.c.l.b16 %v502
        %v555 = vunpack.c.l.b16 %v503
        %v556 = vunpack.c.l.b16 %v504
        %v557 = vunpack.c.l.b16 %v505
        %v558 = vunpack.c.l.b16 %v506
        %v559 = vunpack.c.l.b16 %v507
        %v560 = vunpack.c.l.b16 %v508
        %v561 = vunpack.c.l.b16 %v509
        %v562 = vunpack.c.l.b16 %v510
        %v563 = vpack.c.b16 %v548, %v547
        %v564 = vpack.c.b16 %v550, %v549
        %v565 = vpack.c.b16 %v552, %v551
        %v566 = vpack.c.b16 %v554, %v553
        %v567 = vpack.c.b16 %v556, %v555
        %v568 = vpack.c.b16 %v558, %v557
        %v569 = vpack.c.b16 %v560, %v559
        %v570 = vpack.c.b16 %v562, %v561
        %v595 = vunpack.c.l.b16 %v515
        %v596 = vunpack.c.l.b16 %v516
        %v597 = vunpack.c.l.b16 %v517
        %v598 = vunpack.c.l.b16 %v518
        %v599 = vunpack.c.l.b16 %v519
        %v600 = vunpack.c.l.b16 %v520
        %v601 = vunpack.c.l.b16 %v521
        %v602 = vunpack.c.l.b16 %v522
        %v603 = vunpack.c.l.b16 %v523
        %v604 = vunpack.c.l.b16 %v524
        %v605 = vunpack.c.l.b16 %v525
        %v606 = vunpack.c.l.b16 %v526
        %v607 = vunpack.c.l.b16 %v527
        %v608 = vunpack.c.l.b16 %v528
        %v609 = vunpack.c.l.b16 %v529
        %v610 = vunpack.c.l.b16 %v530
        %v611 = vpack.c.b16 %v596, %v595
        %v612 = vpack.c.b16 %v598, %v597
        %v613 = vpack.c.b16 %v600, %v599
        %v614 = vpack.c.b16 %v602, %v601
        %v615 = vpack.c.b16 %v604, %v603
        %v616 = vpack.c.b16 %v606, %v605
        %v617 = vpack.c.b16 %v608, %v607
        %v618 = vpack.c.b16 %v610, %v609
        %627 = vmatpush.bf16.msra.mxu0 %v618
        %628 = vmatpush.bf16.msra.mxu0 %v617
        %629 = vmatpush.bf16.msra.mxu0 %v616
        %630 = vmatpush.bf16.msra.mxu0 %v615
        %631 = vmatpush.bf16.msra.mxu0 %v614
        %632 = vmatpush.bf16.msra.mxu0 %v613
        %633 = vmatpush.bf16.msra.mxu0 %v612
        %634 = vmatpush.bf16.msra.mxu0 %v611
        %635 = vmatmul.bf16.gmra.mxu0 %v563
        %v636 = vpop.f32.mrf.mxu0
        %v637 = vadd.f32 0.0, %v636
        %v638 = vpop.f32.mrf.mxu0
        %v639 = vadd.f32 0.0, %v638
        %640 = vmatmul.bf16.gmra.mxu0 %v564
        %v641 = vpop.f32.mrf.mxu0
        %v642 = vadd.f32 0.0, %v641
        %v643 = vpop.f32.mrf.mxu0
        %v644 = vadd.f32 0.0, %v643
        %645 = vmatmul.bf16.gmra.mxu0 %v565
        %v646 = vpop.f32.mrf.mxu0
        %v647 = vadd.f32 0.0, %v646
        %v648 = vpop.f32.mrf.mxu0
        %v649 = vadd.f32 0.0, %v648
        %650 = vmatmul.bf16.gmra.mxu0 %v566
        %v651 = vpop.f32.mrf.mxu0
        %v652 = vadd.f32 0.0, %v651
        %v653 = vpop.f32.mrf.mxu0
        %v654 = vadd.f32 0.0, %v653
        %655 = vmatmul.bf16.gmra.mxu0 %v567
        %v656 = vpop.f32.mrf.mxu0
        %v657 = vadd.f32 0.0, %v656
        %v658 = vpop.f32.mrf.mxu0
        %v659 = vadd.f32 0.0, %v658
        %660 = vmatmul.bf16.gmra.mxu0 %v568
        %v661 = vpop.f32.mrf.mxu0
        %v662 = vadd.f32 0.0, %v661
        %v663 = vpop.f32.mrf.mxu0
        %v664 = vadd.f32 0.0, %v663
        %665 = vmatmul.bf16.gmra.mxu0 %v569
        %v666 = vpop.f32.mrf.mxu0
        %v667 = vadd.f32 0.0, %v666
        %v668 = vpop.f32.mrf.mxu0
        %v669 = vadd.f32 0.0, %v668
        %670 = vmatmul.bf16.gmra.mxu0 %v570
        %v671 = vpop.f32.mrf.mxu0
        %v672 = vadd.f32 0.0, %v671
        %v673 = vpop.f32.mrf.mxu0
        %v674 = vadd.f32 0.0, %v673
        %675 = vdwg.mxu0
        %v676 = vadd.f32 %v479, %v637
        %v677 = vadd.f32 %v480, %v639
        %v678 = vadd.f32 %v481, %v642
        %v679 = vadd.f32 %v482, %v644
        %v680 = vadd.f32 %v483, %v647
        %v681 = vadd.f32 %v484, %v649
        %v682 = vadd.f32 %v485, %v652
        %v683 = vadd.f32 %v486, %v654
        %v684 = vadd.f32 %v487, %v657
        %v685 = vadd.f32 %v488, %v659
        %v686 = vadd.f32 %v489, %v662
        %v687 = vadd.f32 %v490, %v664
        %v688 = vadd.f32 %v491, %v667
        %v689 = vadd.f32 %v492, %v669
        %v690 = vadd.f32 %v493, %v672
        %v691 = vadd.f32 %v494, %v674
        %692 = vst [vmem:[#allocation2] sm:$0xff] %v676
        %693 = vst [vmem:[#allocation2 + $0x8] sm:$0xff] %v677
        %694 = vst [vmem:[#allocation2 + $0x10] sm:$0xff] %v678
        %695 = vst [vmem:[#allocation2 + $0x18] sm:$0xff] %v679
        %696 = vst [vmem:[#allocation2 + $0x20] sm:$0xff] %v680
        %697 = vst [vmem:[#allocation2 + $0x28] sm:$0xff] %v681
        %698 = vst [vmem:[#allocation2 + $0x30] sm:$0xff] %v682
        %699 = vst [vmem:[#allocation2 + $0x38] sm:$0xff] %v683
        %700 = vst [vmem:[#allocation2 + $0x40] sm:$0xff] %v684
        %701 = vst [vmem:[#allocation2 + $0x48] sm:$0xff] %v685
        %702 = vst [vmem:[#allocation2 + $0x50] sm:$0xff] %v686
        %703 = vst [vmem:[#allocation2 + $0x58] sm:$0xff] %v687
        %704 = vst [vmem:[#allocation2 + $0x60] sm:$0xff] %v688
        %705 = vst [vmem:[#allocation2 + $0x68] sm:$0xff] %v689
        %706 = vst [vmem:[#allocation2 + $0x70] sm:$0xff] %v690
        %707 = vst [vmem:[#allocation2 + $0x78] sm:$0xff] %v691
        %p708 = scmp.eq.s32.totalorder %s20, 1
        // Predicated region
        $region82: #{gcn_forward.5} parent=72 // pred_check
          %p709 = pneg %p708
        $region83: #{gcn_forward.5} parent=72 // pred_check_branch
          %711 = sbr.rel (%p709) target = $region85
        $region84: #{gcn_forward.5} parent=72 // pred_region
          %v712 = vld [vmem:[#allocation2] sm:$0xff]
          %v713 = vld [vmem:[#allocation2 + $0x8] sm:$0xff]
          %v714 = vld [vmem:[#allocation2 + $0x10] sm:$0xff]
          %v715 = vld [vmem:[#allocation2 + $0x18] sm:$0xff]
          %v716 = vld [vmem:[#allocation2 + $0x20] sm:$0xff]
          %v717 = vld [vmem:[#allocation2 + $0x28] sm:$0xff]
          %v718 = vld [vmem:[#allocation2 + $0x30] sm:$0xff]
          %v719 = vld [vmem:[#allocation2 + $0x38] sm:$0xff]
          %v720 = vld [vmem:[#allocation2 + $0x40] sm:$0xff]
          %v721 = vld [vmem:[#allocation2 + $0x48] sm:$0xff]
          %v722 = vld [vmem:[#allocation2 + $0x50] sm:$0xff]
          %v723 = vld [vmem:[#allocation2 + $0x58] sm:$0xff]
          %v724 = vld [vmem:[#allocation2 + $0x60] sm:$0xff]
          %v725 = vld [vmem:[#allocation2 + $0x68] sm:$0xff]
          %v726 = vld [vmem:[#allocation2 + $0x70] sm:$0xff]
          %v727 = vld [vmem:[#allocation2 + $0x78] sm:$0xff]
          %728 = vst [vmem:[%s340] sm:$0xff] %v712
          %729 = vst [vmem:[%s340 + $0x8] sm:$0xff] %v713
          %730 = vst [vmem:[%s340 + $0x10] sm:$0xff] %v714
          %731 = vst [vmem:[%s340 + $0x18] sm:$0xff] %v715
          %732 = vst [vmem:[%s340 + $0x20] sm:$0xff] %v716
          %733 = vst [vmem:[%s340 + $0x28] sm:$0xff] %v717
          %734 = vst [vmem:[%s340 + $0x30] sm:$0xff] %v718
          %735 = vst [vmem:[%s340 + $0x38] sm:$0xff] %v719
          %736 = vst [vmem:[%s340 + $0x40] sm:$0xff] %v720
          %737 = vst [vmem:[%s340 + $0x48] sm:$0xff] %v721
          %738 = vst [vmem:[%s340 + $0x50] sm:$0xff] %v722
          %739 = vst [vmem:[%s340 + $0x58] sm:$0xff] %v723
          %740 = vst [vmem:[%s340 + $0x60] sm:$0xff] %v724
          %741 = vst [vmem:[%s340 + $0x68] sm:$0xff] %v725
          %742 = vst [vmem:[%s340 + $0x70] sm:$0xff] %v726
          %743 = vst [vmem:[%s340 + $0x78] sm:$0xff] %v727
        $region85: #{gcn_forward.5} parent=72 // pred_fallthru
          _
        %s744 = smul.u32 16, %s19
        %p745 = scmp.lt.s32.totalorder %s744, 31
        %s746 = scalar_select %p745, %s744, 31
        %s747 = smul.addr %s746, 8
        %s748 = scalar_lea.vmem %s4, %s747
        // Predicated region
        $region86: #{gcn_forward.5} parent=72 // pred_check
          %p749 = pneg %p141
        $region87: #{gcn_forward.5} parent=72 // pred_check_branch
          %751 = sbr.rel (%p749) target = $region89
        $region88: #{gcn_forward.5} parent=72 // pred_region
          %s752 = smul.u32 16, %s19
        $region89: #{gcn_forward.5} parent=72 // pred_fallthru
          _
      $region73: #{gcn_forward.5} parent=5 // pred_fallthru
        _
      %p753 = scmp.le.s32.totalorder 2, %s10
      // Predicated region
      $region90: #{gcn_forward.5} parent=5 // pred_check
        %p754 = pneg %p753
      $region91: #{gcn_forward.5} parent=5 // pred_check_branch
        %756 = sbr.rel (%p754) target = $region93
      $region92: #{gcn_forward.5} parent=5 // pred_region
        %s757 = ssub.s32 %s10, 2
        // Predicated region
        $region94: #{gcn_forward.5} parent=92 // pred_check
          %p758 = pneg %p147
        $region95: #{gcn_forward.5} parent=92 // pred_check_branch
          %760 = sbr.rel (%p758) target = $region97
        $region96: #{gcn_forward.5} parent=92 // pred_region
          %s761 = smul.u32 16, %s21
          %p762 = scmp.lt.s32.totalorder %s761, 31
          %s763 = scalar_select %p762, %s761, 31
          %s764 = smul.addr %s763, 8
          %s765 = scalar_lea.vmem %s4, %s764
        $region97: #{gcn_forward.5} parent=92 // pred_fallthru
          _
      $region93: #{gcn_forward.5} parent=5 // pred_fallthru
        _
    $region6: #{gcn_forward.5} parent=1 // loop_footer
      %s14 = sadd.s32 1, %s10
    $region7: #{gcn_forward.5} parent=1 // loop_footer_branch
      %9 = sbr.rel target = $region3
    $region8: #{gcn_forward.5} parent=1 // loop_exit
      _

// kernel: gcn_forward.4
$region0: #{gcn_forward.4}
  #allocation0 [shape = 'u32[]', space=smem, size = 0x4, offset = 0x4, fixed_abs, tag = 'smem constant byte address 0x4 - core index']
  #allocation1 [shape = 'u32[72,128]{1,0:T(1,128)}', space=vmem, size = 0x9000, scoped, tag = 'internal scratch']
  #allocation2 [shape = 'f32[128,128]{1,0:T(8,128)}', space=vmem, size = 0x10000, scoped, tag = 'scratch operand']
  %s0 = inlined_call_operand.vmem [shape: bf16[256,256], index: 0, kind: input, shape index: {}]
  %s1 = inlined_call_operand.vmem [shape: bf16[256,128], index: 1, kind: input, shape index: {}]
  %s2 = inlined_call_operand.vmem [shape: f32[256,1], index: 2, kind: input, shape index: {}]
  %s3 = inlined_call_operand.vmem [shape: f32[1,128], index: 3, kind: input, shape index: {}]
  %s4 = inlined_call_operand.vmem [shape: bf16[128,128], index: 4, kind: input, shape index: {}]
  %s5 = inlined_call_operand.vmem [shape: bf16[256,128], index: 5, kind: output, shape index: {}]
  %s6 = sld [smem:[#allocation0]]
  $region102: #{gcn_forward.4} parent=0
    _
  %s8 = ssub.s32 1, %s6
  %s9 = scalar_select 0, %s8, %s6
  $region1: #{gcn_forward.4} parent=0
    #allocation3 [shape = 'u8[65536]{0}', space=vmem, size = 0x10000, scoped, tag = 'input window, operand 0']
    loop: start=0, step=1, limit=6
    $region2: #{gcn_forward.4} parent=1 // loop_pre_header
      _
    $region3: #{gcn_forward.4} parent=1 // loop_header
      %s11 = sphi 0, %s15
      %p12 = scmp.ge.s32.totalorder %s11, 6
      %s18 = sphi 0, %s30
      %s19 = sphi 0, %s26
      %s20 = sphi 0, %s18
      %s21 = sphi 0, %s19
      %s22 = sphi 0, %s20
      %s23 = sphi 0, %s21
      %s35 = sphi 0, %s37
      %s38 = sphi 0, %s35
      %s39 = sphi 0, %s38
      %s55 = sphi 0, %s39
      %s59 = sphi 0, %s59
      %s61 = sphi 0, %s59
      %s62 = sphi 0, %s61
      %s76 = sphi 0, %s62
      %s82 = sphi 0, %s84
      %s85 = sphi 0, %s82
      %s86 = sphi 0, %s85
      %s102 = sphi 0, %s86
      %s106 = sphi 0, %s106
      %s108 = sphi 0, %s106
      %s109 = sphi 0, %s108
      %s123 = sphi 0, %s109
      %s127 = sphi 0, %s127
      %s129 = sphi 0, %s127
      %s130 = sphi 0, %s129
      %s144 = sphi 0, %s130
      %s150 = sphi 0, %s152
      %s153 = sphi 0, %s150
      %s154 = sphi 0, %s153
      %s170 = sphi 0, %s154
    $region4: #{gcn_forward.4} parent=1 // loop_header_branch
      %14 = sbr.rel (%p12) target = $region8
    $region5: #{gcn_forward.4} parent=1 // loop_body
      %s16 = ssub.s32 %s11, 1
      %s17 = ssub.s32 %s11, 2
      %s24 = sadd.s32 1, %s19
      %p25 = scmp.ge.s32.totalorder %s24, 2
      %s26 = scalar_select %p25, 0, %s24
      %s27 = sadd.s32 1, %s18
      %s28 = scalar_select %p25, %s27, %s18
      %p29 = scmp.ge.s32.totalorder %s28, 2
      %s30 = scalar_select %p29, 0, %s28
      %s31 = ssub.s32 %s18, %s30
      %s32 = ssub.s32 %s19, %s26
      %s33 = sor.u32 %s31, %s32
      %p34 = scmp.eq.s32.totalorder %s33, 0
      %s36 = sadd.s32 %s35, 1
      %s37 = scalar_select %p34, %s35, %s36
      %p40 = pneg %p34
      %p41 = scmp.eq.s32.totalorder %s11, 3
      %p42 = por %p40, %p41
      %p43 = scmp.ne.s32.totalorder %s35, %s38
      %p44 = scmp.eq.s32.totalorder %s11, 0
      %p45 = por %p43, %p44
      %p46 = scmp.ne.s32.totalorder %s35, %s38
      %p47 = scmp.eq.s32.totalorder %s16, 3
      %p48 = por %p46, %p47
      %p49 = scmp.ne.s32.totalorder %s38, %s39
      %p50 = scmp.eq.s32.totalorder %s16, 0
      %p51 = por %p49, %p50
      %p52 = scmp.ne.s32.totalorder %s38, %s39
      %p53 = scmp.eq.s32.totalorder %s17, 3
      %p54 = por %p52, %p53
      %p56 = scmp.ne.s32.totalorder %s39, %s55
      %p57 = scmp.eq.s32.totalorder %s17, 0
      %p58 = por %p56, %p57
      %s60 = sadd.s32 %s59, 1
      %p63 = scmp.eq.s32.totalorder %s11, 3
      %p64 = scmp.ne.s32.totalorder %s59, %s61
      %p65 = scmp.eq.s32.totalorder %s11, 0
      %p66 = por %p64, %p65
      %p67 = scmp.ne.s32.totalorder %s59, %s61
      %p68 = scmp.eq.s32.totalorder %s16, 3
      %p69 = por %p67, %p68
      %p70 = scmp.ne.s32.totalorder %s61, %s62
      %p71 = scmp.eq.s32.totalorder %s16, 0
      %p72 = por %p70, %p71
      %p73 = scmp.ne.s32.totalorder %s61, %s62
      %p74 = scmp.eq.s32.totalorder %s17, 3
      %p75 = por %p73, %p74
      %p77 = scmp.ne.s32.totalorder %s62, %s76
      %p78 = scmp.eq.s32.totalorder %s17, 0
      %p79 = por %p77, %p78
      %s80 = ssub.s32 %s18, %s30
      %p81 = scmp.eq.s32.totalorder %s80, 0
      %s83 = sadd.s32 %s82, 1
      %s84 = scalar_select %p81, %s82, %s83
      %p87 = pneg %p81
      %p88 = scmp.eq.s32.totalorder %s11, 3
      %p89 = por %p87, %p88
      %p90 = scmp.ne.s32.totalorder %s82, %s85
      %p91 = scmp.eq.s32.totalorder %s11, 0
      %p92 = por %p90, %p91
      %p93 = scmp.ne.s32.totalorder %s82, %s85
      %p94 = scmp.eq.s32.totalorder %s16, 3
      %p95 = por %p93, %p94
      %p96 = scmp.ne.s32.totalorder %s85, %s86
      %p97 = scmp.eq.s32.totalorder %s16, 0
      %p98 = por %p96, %p97
      %p99 = scmp.ne.s32.totalorder %s85, %s86
      %p100 = scmp.eq.s32.totalorder %s17, 3
      %p101 = por %p99, %p100
      %p103 = scmp.ne.s32.totalorder %s86, %s102
      %p104 = scmp.eq.s32.totalorder %s17, 0
      %p105 = por %p103, %p104
      %s107 = sadd.s32 %s106, 1
      %p110 = scmp.eq.s32.totalorder %s11, 3
      %p111 = scmp.ne.s32.totalorder %s106, %s108
      %p112 = scmp.eq.s32.totalorder %s11, 0
      %p113 = por %p111, %p112
      %p114 = scmp.ne.s32.totalorder %s106, %s108
      %p115 = scmp.eq.s32.totalorder %s16, 3
      %p116 = por %p114, %p115
      %p117 = scmp.ne.s32.totalorder %s108, %s109
      %p118 = scmp.eq.s32.totalorder %s16, 0
      %p119 = por %p117, %p118
      %p120 = scmp.ne.s32.totalorder %s108, %s109
      %p121 = scmp.eq.s32.totalorder %s17, 3
      %p122 = por %p120, %p121
      %p124 = scmp.ne.s32.totalorder %s109, %s123
      %p125 = scmp.eq.s32.totalorder %s17, 0
      %p126 = por %p124, %p125
      %s128 = sadd.s32 %s127, 1
      %p131 = scmp.eq.s32.totalorder %s11, 3
      %p132 = scmp.ne.s32.totalorder %s127, %s129
      %p133 = scmp.eq.s32.totalorder %s11, 0
      %p134 = por %p132, %p133
      %p135 = scmp.ne.s32.totalorder %s127, %s129
      %p136 = scmp.eq.s32.totalorder %s16, 3
      %p137 = por %p135, %p136
      %p138 = scmp.ne.s32.totalorder %s129, %s130
      %p139 = scmp.eq.s32.totalorder %s16, 0
      %p140 = por %p138, %p139
      %p141 = scmp.ne.s32.totalorder %s129, %s130
      %p142 = scmp.eq.s32.totalorder %s17, 3
      %p143 = por %p141, %p142
      %p145 = scmp.ne.s32.totalorder %s130, %s144
      %p146 = scmp.eq.s32.totalorder %s17, 0
      %p147 = por %p145, %p146
      %s148 = ssub.s32 %s18, %s30
      %p149 = scmp.eq.s32.totalorder %s148, 0
      %s151 = sadd.s32 %s150, 1
      %s152 = scalar_select %p149, %s150, %s151
      %p155 = pneg %p149
      %p156 = scmp.eq.s32.totalorder %s11, 3
      %p157 = por %p155, %p156
      %p158 = scmp.ne.s32.totalorder %s150, %s153
      %p159 = scmp.eq.s32.totalorder %s11, 0
      %p160 = por %p158, %p159
      %p161 = scmp.ne.s32.totalorder %s150, %s153
      %p162 = scmp.eq.s32.totalorder %s16, 3
      %p163 = por %p161, %p162
      %p164 = scmp.ne.s32.totalorder %s153, %s154
      %p165 = scmp.eq.s32.totalorder %s16, 0
      %p166 = por %p164, %p165
      %p167 = scmp.ne.s32.totalorder %s153, %s154
      %p168 = scmp.eq.s32.totalorder %s17, 3
      %p169 = por %p167, %p168
      %p171 = scmp.ne.s32.totalorder %s154, %s170
      %p172 = scmp.eq.s32.totalorder %s17, 0
      %p173 = por %p171, %p172
      %p174 = scmp.le.s32.totalorder 1, %s11
      %p175 = scmp.lt.s32.totalorder %s11, 5
      %p176 = pnand %p174, %p175
      %p177 = pneg %p176
      // Predicated region
      $region9: #{gcn_forward.4} parent=5 // pred_check
        _
      $region10: #{gcn_forward.4} parent=5 // pred_check_branch
        %179 = sbr.rel (%p176) target = $region12
      $region11: #{gcn_forward.4} parent=5 // pred_region
        %s180 = ssub.s32 %s11, 1
        // Predicated region
        $region13: #{gcn_forward.4} parent=11 // pred_check
          %p181 = pneg %p72
        $region14: #{gcn_forward.4} parent=11 // pred_check_branch
          %183 = sbr.rel (%p181) target = $region16
        $region15: #{gcn_forward.4} parent=11 // pred_region
          _
        $region16: #{gcn_forward.4} parent=11 // pred_fallthru
          _
        // Predicated region
        $region17: #{gcn_forward.4} parent=11 // pred_check
          %p184 = pneg %p119
        $region18: #{gcn_forward.4} parent=11 // pred_check_branch
          %186 = sbr.rel (%p184) target = $region20
        $region19: #{gcn_forward.4} parent=11 // pred_region
          _
        $region20: #{gcn_forward.4} parent=11 // pred_fallthru
          _
        // Predicated region
        $region21: #{gcn_forward.4} parent=11 // pred_check
          %p187 = pneg %p140
        $region22: #{gcn_forward.4} parent=11 // pred_check_branch
          %189 = sbr.rel (%p187) target = $region24
        $region23: #{gcn_forward.4} parent=11 // pred_region
          _
        $region24: #{gcn_forward.4} parent=11 // pred_fallthru
          _
      $region12: #{gcn_forward.4} parent=5 // pred_fallthru
        _
      %p190 = scmp.lt.s32.totalorder %s11, 4
      // Predicated region
      $region25: #{gcn_forward.4} parent=5 // pred_check
        %p191 = pneg %p190
      $region26: #{gcn_forward.4} parent=5 // pred_check_branch
        %193 = sbr.rel (%p191) target = $region28
      $region27: #{gcn_forward.4} parent=5 // pred_region
        // Predicated region
        $region29: #{gcn_forward.4} parent=27 // pred_check
          %p194 = pneg %p45
        $region30: #{gcn_forward.4} parent=27 // pred_check_branch
          %196 = sbr.rel (%p194) target = $region32
        $region31: #{gcn_forward.4} parent=27 // pred_region
          %s197 = sand.u32 %s35, 1
          %s198 = sand.u32 %s35, 1
          %s199 = smul.addr %s198, 64
          %s200 = scalar_lea.vmem [#allocation3], %s199
          %s201 = smul.u32 16, %s18
          %s202 = smul.addr %s201, 2
          %s203 = sadd.s32 %s19, %s202
          %s204 = smul.addr %s203, 4
          %s205 = scalar_lea.vmem %s0, %s204
          // Predicated region
          $region33: #{gcn_forward.4} parent=31 // pred_check
            _
          $region34: #{gcn_forward.4} parent=31 // pred_check_branch
            %207 = sbr.rel (0) target = $region36
          $region35: #{gcn_forward.4} parent=31 // pred_region
            // Predicated region
            $region37: #{gcn_forward.4} parent=35 // pred_check
              _
            $region38: #{gcn_forward.4} parent=35 // pred_check_branch
              %209 = sbr.rel target = $region40
            $region39: #{gcn_forward.4} parent=35 // pred_region
              // Predicated region
              $region52: #{gcn_forward.4} parent=39 // pred_check
                _
              $region53: #{gcn_forward.4} parent=39 // pred_check_branch
                %255 = sbr.rel (0) target = $region55
              $region54: #{gcn_forward.4} parent=39 // pred_region
                loop: start=0, step=1, limit=1
                $region56: #{gcn_forward.4} parent=54 // loop_pre_header
                  _
                $region57: #{gcn_forward.4} parent=54 // loop_header
                  %s257 = sphi 0, %s261
                  %p258 = scmp.ge.s32.totalorder %s257, 1
                  %s262 = sphi %s205, %s205
                  %s263 = sphi %s200, %s200
                $region58: #{gcn_forward.4} parent=54 // loop_header_branch
                  %260 = sbr.rel (%p258) target = $region62
                $region59: #{gcn_forward.4} parent=54 // loop_body
                  _
                $region60: #{gcn_forward.4} parent=54 // loop_footer
                  %s261 = sadd.s32 1, %s257
                $region61: #{gcn_forward.4} parent=54 // loop_footer_branch
                  %256 = sbr.rel target = $region57
                $region62: #{gcn_forward.4} parent=54 // loop_exit
                  _
                %s265 = ssub.s32 16, 1
                loop: start=0, step=1, limit=1
                $region63: #{gcn_forward.4} parent=54 // loop_pre_header
                  _
                $region64: #{gcn_forward.4} parent=54 // loop_header
                  %s267 = sphi 0, %s271
                  %p268 = scmp.ge.s32.totalorder %s267, 1
                  %s272 = sphi %s205, %s205
                  %s273 = sphi %s200, %s200
                $region65: #{gcn_forward.4} parent=54 // loop_header_branch
                  %270 = sbr.rel (%p268) target = $region69
                $region66: #{gcn_forward.4} parent=54 // loop_body
                  %v274 = vld [vmem:[%s272] sm:%s265]
                  %275 = vst [vmem:[%s273] sm:%s265] %v274
                  %v276 = vld [vmem:[%s272 + $0x8] sm:%s265]
                  %277 = vst [vmem:[%s273 + $0x4] sm:%s265] %v276
                  %v278 = vld [vmem:[%s272 + $0x10] sm:%s265]
                  %279 = vst [vmem:[%s273 + $0x8] sm:%s265] %v278
                  %v280 = vld [vmem:[%s272 + $0x18] sm:%s265]
                  %281 = vst [vmem:[%s273 + $0xc] sm:%s265] %v280
                  %v282 = vld [vmem:[%s272 + $0x20] sm:%s265]
                  %283 = vst [vmem:[%s273 + $0x10] sm:%s265] %v282
                  %v284 = vld [vmem:[%s272 + $0x28] sm:%s265]
                  %285 = vst [vmem:[%s273 + $0x14] sm:%s265] %v284
                  %v286 = vld [vmem:[%s272 + $0x30] sm:%s265]
                  %287 = vst [vmem:[%s273 + $0x18] sm:%s265] %v286
                  %v288 = vld [vmem:[%s272 + $0x38] sm:%s265]
                  %289 = vst [vmem:[%s273 + $0x1c] sm:%s265] %v288
                  %v290 = vld [vmem:[%s272 + $0x40] sm:%s265]
                  %291 = vst [vmem:[%s273 + $0x20] sm:%s265] %v290
                  %v292 = vld [vmem:[%s272 + $0x48] sm:%s265]
                  %293 = vst [vmem:[%s273 + $0x24] sm:%s265] %v292
                  %v294 = vld [vmem:[%s272 + $0x50] sm:%s265]
                  %295 = vst [vmem:[%s273 + $0x28] sm:%s265] %v294
                  %v296 = vld [vmem:[%s272 + $0x58] sm:%s265]
                  %297 = vst [vmem:[%s273 + $0x2c] sm:%s265] %v296
                  %v298 = vld [vmem:[%s272 + $0x60] sm:%s265]
                  %299 = vst [vmem:[%s273 + $0x30] sm:%s265] %v298
                  %v300 = vld [vmem:[%s272 + $0x68] sm:%s265]
                  %301 = vst [vmem:[%s273 + $0x34] sm:%s265] %v300
                  %v302 = vld [vmem:[%s272 + $0x70] sm:%s265]
                  %303 = vst [vmem:[%s273 + $0x38] sm:%s265] %v302
                  %v304 = vld [vmem:[%s272 + $0x78] sm:%s265]
                  %305 = vst [vmem:[%s273 + $0x3c] sm:%s265] %v304
                $region67: #{gcn_forward.4} parent=54 // loop_footer
                  %s271 = sadd.s32 1, %s267
                $region68: #{gcn_forward.4} parent=54 // loop_footer_branch
                  %266 = sbr.rel target = $region64
                $region69: #{gcn_forward.4} parent=54 // loop_exit
                  _
              $region55: #{gcn_forward.4} parent=39 // pred_fallthru
                _
            $region40: #{gcn_forward.4} parent=35 // pred_fallthru
              _
            // Predicated region
            $region41: #{gcn_forward.4} parent=35 // pred_check
              _
            $region42: #{gcn_forward.4} parent=35 // pred_check_branch
              %211 = sbr.rel (0) target = $region44
            $region43: #{gcn_forward.4} parent=35 // pred_region
              %s213 = ssub.s32 16, 1
              loop: start=0, step=1, limit=1
              $region45: #{gcn_forward.4} parent=43 // loop_pre_header
                _
              $region46: #{gcn_forward.4} parent=43 // loop_header
                %s215 = sphi 0, %s219
                %p216 = scmp.ge.s32.totalorder %s215, 1
                %s220 = sphi %s205, %s205
                %s221 = sphi %s200, %s200
              $region47: #{gcn_forward.4} parent=43 // loop_header_branch
                %218 = sbr.rel (%p216) target = $region51
              $region48: #{gcn_forward.4} parent=43 // loop_body
                %v222 = vld [vmem:[%s220] sm:%s213]
                %223 = vst [vmem:[%s221] sm:%s213] %v222
                %v224 = vld [vmem:[%s220 + $0x8] sm:%s213]
                %225 = vst [vmem:[%s221 + $0x4] sm:%s213] %v224
                %v226 = vld [vmem:[%s220 + $0x10] sm:%s213]
                %227 = vst [vmem:[%s221 + $0x8] sm:%s213] %v226
                %v228 = vld [vmem:[%s220 + $0x18] sm:%s213]
                %229 = vst [vmem:[%s221 + $0xc] sm:%s213] %v228
                %v230 = vld [vmem:[%s220 + $0x20] sm:%s213]
                %231 = vst [vmem:[%s221 + $0x10] sm:%s213] %v230
                %v232 = vld [vmem:[%s220 + $0x28] sm:%s213]
                %233 = vst [vmem:[%s221 + $0x14] sm:%s213] %v232
                %v234 = vld [vmem:[%s220 + $0x30] sm:%s213]
                %235 = vst [vmem:[%s221 + $0x18] sm:%s213] %v234
                %v236 = vld [vmem:[%s220 + $0x38] sm:%s213]
                %237 = vst [vmem:[%s221 + $0x1c] sm:%s213] %v236
                %v238 = vld [vmem:[%s220 + $0x40] sm:%s213]
                %239 = vst [vmem:[%s221 + $0x20] sm:%s213] %v238
                %v240 = vld [vmem:[%s220 + $0x48] sm:%s213]
                %241 = vst [vmem:[%s221 + $0x24] sm:%s213] %v240
                %v242 = vld [vmem:[%s220 + $0x50] sm:%s213]
                %243 = vst [vmem:[%s221 + $0x28] sm:%s213] %v242
                %v244 = vld [vmem:[%s220 + $0x58] sm:%s213]
                %245 = vst [vmem:[%s221 + $0x2c] sm:%s213] %v244
                %v246 = vld [vmem:[%s220 + $0x60] sm:%s213]
                %247 = vst [vmem:[%s221 + $0x30] sm:%s213] %v246
                %v248 = vld [vmem:[%s220 + $0x68] sm:%s213]
                %249 = vst [vmem:[%s221 + $0x34] sm:%s213] %v248
                %v250 = vld [vmem:[%s220 + $0x70] sm:%s213]
                %251 = vst [vmem:[%s221 + $0x38] sm:%s213] %v250
                %v252 = vld [vmem:[%s220 + $0x78] sm:%s213]
                %253 = vst [vmem:[%s221 + $0x3c] sm:%s213] %v252
              $region49: #{gcn_forward.4} parent=43 // loop_footer
                %s219 = sadd.s32 1, %s215
              $region50: #{gcn_forward.4} parent=43 // loop_footer_branch
                %214 = sbr.rel target = $region46
              $region51: #{gcn_forward.4} parent=43 // loop_exit
                _
            $region44: #{gcn_forward.4} parent=35 // pred_fallthru
              _
          $region36: #{gcn_forward.4} parent=31 // pred_fallthru
            _
          %306 = vnop
        $region32: #{gcn_forward.4} parent=27 // pred_fallthru
          _
        // Predicated region
        $region70: #{gcn_forward.4} parent=27 // pred_check
          %p307 = pneg %p92
        $region71: #{gcn_forward.4} parent=27 // pred_check_branch
          %309 = sbr.rel (%p307) target = $region73
        $region72: #{gcn_forward.4} parent=27 // pred_region
          %s310 = smul.u32 16, %s18
          %p311 = scmp.lt.s32.totalorder %s310, 31
          %s312 = scalar_select %p311, %s310, 31
          %s313 = smul.addr %s312, 8
          %s314 = scalar_lea.vmem %s2, %s313
          %s315 = smul.u32 16, %s18
        $region73: #{gcn_forward.4} parent=27 // pred_fallthru
          _
      $region28: #{gcn_forward.4} parent=5 // pred_fallthru
        _
      %p316 = scmp.le.s32.totalorder 1, %s11
      %p317 = scmp.lt.s32.totalorder %s11, 5
      %p318 = pnand %p316, %p317
      %p319 = pneg %p318
      // Predicated region
      $region74: #{gcn_forward.4} parent=5 // pred_check
        _
      $region75: #{gcn_forward.4} parent=5 // pred_check_branch
        %321 = sbr.rel (%p318) target = $region77
      $region76: #{gcn_forward.4} parent=5 // pred_region
        %s322 = ssub.s32 %s11, 1
        %s323 = sand.u32 %s38, 1
        %s324 = sand.u32 %s38, 1
        %s325 = smul.addr %s324, 64
        %s326 = scalar_lea.vmem [#allocation3], %s325
        // Predicated region
        $region78: #{gcn_forward.4} parent=76 // pred_check
          %p327 = pneg %p51
        $region79: #{gcn_forward.4} parent=76 // pred_check_branch
          %329 = sbr.rel (%p327) target = $region81
        $region80: #{gcn_forward.4} parent=76 // pred_region
          _
        $region81: #{gcn_forward.4} parent=76 // pred_fallthru
          _
        %s330 = sand.u32 %s38, 1
        %s331 = sand.u32 %s38, 1
        %s332 = smul.addr %s331, 64
        %s333 = scalar_lea.vmem [#allocation3], %s332
        %p334 = pneg %p51
        %p335 = pneg %p48
        %p336 = pneg %p72
        %p337 = pneg %p69
        %s338 = smul.u32 16, %s20
        %p339 = scmp.lt.s32.totalorder %s338, 31
        %s340 = scalar_select %p339, %s338, 31
        %s341 = smul.addr %s340, 8
        %s342 = scalar_lea.vmem %s2, %s341
        %p343 = pneg %p98
        %p344 = pneg %p95
        %p345 = pneg %p119
        %p346 = pneg %p116
        %p347 = pneg %p140
        %p348 = pneg %p137
        %p349 = pneg %p166
        %p350 = pneg %p163
        %s351 = smul.u32 16, %s20
        %p352 = scmp.lt.s32.totalorder %s351, 31
        %s353 = scalar_select %p352, %s351, 31
        %s354 = smul.addr %s353, 4
        %s355 = scalar_lea.vmem %s5, %s354
        %s356 = smul.u32 16, %s20
        %s357 = smul.u32 16, %s20
        %p358 = scmp.lt.s32.totalorder %s357, 31
        %s359 = scalar_select %p358, %s357, 31
        %s360 = smul.addr %s359, 8
        %s361 = scalar_lea.vmem %s2, %s360
        %s362 = smul.u32 16, %s20
        %s363 = smul.u32 16, %s20
        %p364 = scmp.lt.s32.totalorder %s363, 31
        %s365 = scalar_select %p364, %s363, 31
        %s366 = smul.addr %s365, 4
        %s367 = scalar_lea.vmem %s5, %s366
        %s368 = smul.u32 16, %s20
        %p369 = scmp.eq.s32.totalorder %s21, 0
        // Predicated region
        $region82: #{gcn_forward.4} parent=76 // pred_check
          %p370 = pneg %p369
        $region83: #{gcn_forward.4} parent=76 // pred_check_branch
          %372 = sbr.rel (%p370) target = $region85
        $region84: #{gcn_forward.4} parent=76 // pred_region
          %v373 = vld [vmem:[%s361] sm:$0xff]
          %v374 = vld [vmem:[%s361 + $0x8] sm:$0xff]
          %v375 = vld [vmem:[%s361 + $0x10] sm:$0xff]
          %v376 = vld [vmem:[%s361 + $0x18] sm:$0xff]
          %v377 = vld [vmem:[%s361 + $0x20] sm:$0xff]
          %v378 = vld [vmem:[%s361 + $0x28] sm:$0xff]
          %v379 = vld [vmem:[%s361 + $0x30] sm:$0xff]
          %v380 = vld [vmem:[%s361 + $0x38] sm:$0xff]
          %v381 = vld [vmem:[%s361 + $0x40] sm:$0xff]
          %v382 = vld [vmem:[%s361 + $0x48] sm:$0xff]
          %v383 = vld [vmem:[%s361 + $0x50] sm:$0xff]
          %v384 = vld [vmem:[%s361 + $0x58] sm:$0xff]
          %v385 = vld [vmem:[%s361 + $0x60] sm:$0xff]
          %v386 = vld [vmem:[%s361 + $0x68] sm:$0xff]
          %v387 = vld [vmem:[%s361 + $0x70] sm:$0xff]
          %v388 = vld [vmem:[%s361 + $0x78] sm:$0xff]
          %v389 = vld [vmem:[%s3] sm:$0x1]
          %391 = vset.pattern.permute.xlu0 0
          %392 = vperm.xlu0 %391, %v373
          %v393 = vpop.permute.xlu0 %392
          %396 = vset.pattern.permute.xlu0 0
          %397 = vperm.xlu0 %396, %v374
          %v398 = vpop.permute.xlu0 %397
          %401 = vset.pattern.permute.xlu0 0
          %402 = vperm.xlu0 %401, %v375
          %v403 = vpop.permute.xlu0 %402
          %406 = vset.pattern.permute.xlu0 0
          %407 = vperm.xlu0 %406, %v376
          %v408 = vpop.permute.xlu0 %407
          %411 = vset.pattern.permute.xlu0 0
          %412 = vperm.xlu0 %411, %v377
          %v413 = vpop.permute.xlu0 %412
          %416 = vset.pattern.permute.xlu0 0
          %417 = vperm.xlu0 %416, %v378
          %v418 = vpop.permute.xlu0 %417
          %421 = vset.pattern.permute.xlu0 0
          %422 = vperm.xlu0 %421, %v379
          %v423 = vpop.permute.xlu0 %422
          %426 = vset.pattern.permute.xlu0 0
          %427 = vperm.xlu0 %426, %v380
          %v428 = vpop.permute.xlu0 %427
          %431 = vset.pattern.permute.xlu0 0
          %432 = vperm.xlu0 %431, %v381
          %v433 = vpop.permute.xlu0 %432
          %436 = vset.pattern.permute.xlu0 0
          %437 = vperm.xlu0 %436, %v382
          %v438 = vpop.permute.xlu0 %437
          %441 = vset.pattern.permute.xlu0 0
          %442 = vperm.xlu0 %441, %v383
          %v443 = vpop.permute.xlu0 %442
          %446 = vset.pattern.permute.xlu0 0
          %447 = vperm.xlu0 %446, %v384
          %v448 = vpop.permute.xlu0 %447
          %451 = vset.pattern.permute.xlu0 0
          %452 = vperm.xlu0 %451, %v385
          %v453 = vpop.permute.xlu0 %452
          %456 = vset.pattern.permute.xlu0 0
          %457 = vperm.xlu0 %456, %v386
          %v458 = vpop.permute.xlu0 %457
          %461 = vset.pattern.permute.xlu0 0
          %462 = vperm.xlu0 %461, %v387
          %v463 = vpop.permute.xlu0 %462
          %466 = vset.pattern.permute.xlu0 0
          %467 = vperm.xlu0 %466, %v388
          %v468 = vpop.permute.xlu0 %467
          %v471 = vperm.slane %v389, 0
          %v473 = vmul.f32 %v393, %v471
          %v474 = vmul.f32 %v398, %v471
          %v475 = vmul.f32 %v403, %v471
          %v476 = vmul.f32 %v408, %v471
          %v477 = vmul.f32 %v413, %v471
          %v478 = vmul.f32 %v418, %v471
          %v479 = vmul.f32 %v423, %v471
          %v480 = vmul.f32 %v428, %v471
          %v481 = vmul.f32 %v433, %v471
          %v482 = vmul.f32 %v438, %v471
          %v483 = vmul.f32 %v443, %v471
          %v484 = vmul.f32 %v448, %v471
          %v485 = vmul.f32 %v453, %v471
          %v486 = vmul.f32 %v458, %v471
          %v487 = vmul.f32 %v463, %v471
          %v488 = vmul.f32 %v468, %v471
          %489 = vst [vmem:[#allocation2] sm:$0xff] %v473
          %490 = vst [vmem:[#allocation2 + $0x8] sm:$0xff] %v474
          %491 = vst [vmem:[#allocation2 + $0x10] sm:$0xff] %v475
          %492 = vst [vmem:[#allocation2 + $0x18] sm:$0xff] %v476
          %493 = vst [vmem:[#allocation2 + $0x20] sm:$0xff] %v477
          %494 = vst [vmem:[#allocation2 + $0x28] sm:$0xff] %v478
          %495 = vst [vmem:[#allocation2 + $0x30] sm:$0xff] %v479
          %496 = vst [vmem:[#allocation2 + $0x38] sm:$0xff] %v480
          %497 = vst [vmem:[#allocation2 + $0x40] sm:$0xff] %v481
          %498 = vst [vmem:[#allocation2 + $0x48] sm:$0xff] %v482
          %499 = vst [vmem:[#allocation2 + $0x50] sm:$0xff] %v483
          %500 = vst [vmem:[#allocation2 + $0x58] sm:$0xff] %v484
          %501 = vst [vmem:[#allocation2 + $0x60] sm:$0xff] %v485
          %502 = vst [vmem:[#allocation2 + $0x68] sm:$0xff] %v486
          %503 = vst [vmem:[#allocation2 + $0x70] sm:$0xff] %v487
          %504 = vst [vmem:[#allocation2 + $0x78] sm:$0xff] %v488
        $region85: #{gcn_forward.4} parent=76 // pred_fallthru
          _
        %s505 = smul.u32 %s21, 128
        %v506 = vld [vmem:[#allocation2] sm:$0xff]
        %v507 = vld [vmem:[#allocation2 + $0x8] sm:$0xff]
        %v508 = vld [vmem:[#allocation2 + $0x10] sm:$0xff]
        %v509 = vld [vmem:[#allocation2 + $0x18] sm:$0xff]
        %v510 = vld [vmem:[#allocation2 + $0x20] sm:$0xff]
        %v511 = vld [vmem:[#allocation2 + $0x28] sm:$0xff]
        %v512 = vld [vmem:[#allocation2 + $0x30] sm:$0xff]
        %v513 = vld [vmem:[#allocation2 + $0x38] sm:$0xff]
        %v514 = vld [vmem:[#allocation2 + $0x40] sm:$0xff]
        %v515 = vld [vmem:[#allocation2 + $0x48] sm:$0xff]
        %v516 = vld [vmem:[#allocation2 + $0x50] sm:$0xff]
        %v517 = vld [vmem:[#allocation2 + $0x58] sm:$0xff]
        %v518 = vld [vmem:[#allocation2 + $0x60] sm:$0xff]
        %v519 = vld [vmem:[#allocation2 + $0x68] sm:$0xff]
        %v520 = vld [vmem:[#allocation2 + $0x70] sm:$0xff]
        %v521 = vld [vmem:[#allocation2 + $0x78] sm:$0xff]
        %v522 = vld [vmem:[%s326] sm:$0xf]
        %v523 = vld [vmem:[%s326 + $0x4] sm:$0xf]
        %v524 = vld [vmem:[%s326 + $0x8] sm:$0xf]
        %v525 = vld [vmem:[%s326 + $0xc] sm:$0xf]
        %v526 = vld [vmem:[%s326 + $0x10] sm:$0xf]
        %v527 = vld [vmem:[%s326 + $0x14] sm:$0xf]
        %v528 = vld [vmem:[%s326 + $0x18] sm:$0xf]
        %v529 = vld [vmem:[%s326 + $0x1c] sm:$0xf]
        %v530 = vld [vmem:[%s326 + $0x20] sm:$0xf]
        %v531 = vld [vmem:[%s326 + $0x24] sm:$0xf]
        %v532 = vld [vmem:[%s326 + $0x28] sm:$0xf]
        %v533 = vld [vmem:[%s326 + $0x2c] sm:$0xf]
        %v534 = vld [vmem:[%s326 + $0x30] sm:$0xf]
        %v535 = vld [vmem:[%s326 + $0x34] sm:$0xf]
        %v536 = vld [vmem:[%s326 + $0x38] sm:$0xf]
        %v537 = vld [vmem:[%s326 + $0x3c] sm:$0xf]
        %s538 = sshra.s32 %s505, 3
        %s539 = sand.u32 %s505, 7
        %s540 = smul.addr %s538, 4
        %s541 = scalar_lea.vmem %s1, %s540
        %v542 = vld [vmem:[%s541] sm:$0xf]
        %v543 = vld [vmem:[%s541 + $0x4] sm:$0xf]
        %v544 = vld [vmem:[%s541 + $0x8] sm:$0xf]
        %v545 = vld [vmem:[%s541 + $0xc] sm:$0xf]
        %v546 = vld [vmem:[%s541 + $0x10] sm:$0xf]
        %v547 = vld [vmem:[%s541 + $0x14] sm:$0xf]
        %v548 = vld [vmem:[%s541 + $0x18] sm:$0xf]
        %v549 = vld [vmem:[%s541 + $0x1c] sm:$0xf]
        %v550 = vld [vmem:[%s541 + $0x20] sm:$0xf]
        %v551 = vld [vmem:[%s541 + $0x24] sm:$0xf]
        %v552 = vld [vmem:[%s541 + $0x28] sm:$0xf]
        %v553 = vld [vmem:[%s541 + $0x2c] sm:$0xf]
        %v554 = vld [vmem:[%s541 + $0x30] sm:$0xf]
        %v555 = vld [vmem:[%s541 + $0x34] sm:$0xf]
        %v556 = vld [vmem:[%s541 + $0x38] sm:$0xf]
        %v557 = vld [vmem:[%s541 + $0x3c] sm:$0xf]
        %v574 = vunpack.c.l.b16 %v522
        %v575 = vunpack.c.l.b16 %v523
        %v576 = vunpack.c.l.b16 %v524
        %v577 = vunpack.c.l.b16 %v525
        %v578 = vunpack.c.l.b16 %v526
        %v579 = vunpack.c.l.b16 %v527
        %v580 = vunpack.c.l.b16 %v528
        %v581 = vunpack.c.l.b16 %v529
        %v582 = vunpack.c.l.b16 %v530
        %v583 = vunpack.c.l.b16 %v531
        %v584 = vunpack.c.l.b16 %v532
        %v585 = vunpack.c.l.b16 %v533
        %v586 = vunpack.c.l.b16 %v534
        %v587 = vunpack.c.l.b16 %v535
        %v588 = vunpack.c.l.b16 %v536
        %v589 = vunpack.c.l.b16 %v537
        %v590 = vpack.c.b16 %v575, %v574
        %v591 = vpack.c.b16 %v577, %v576
        %v592 = vpack.c.b16 %v579, %v578
        %v593 = vpack.c.b16 %v581, %v580
        %v594 = vpack.c.b16 %v583, %v582
        %v595 = vpack.c.b16 %v585, %v584
        %v596 = vpack.c.b16 %v587, %v586
        %v597 = vpack.c.b16 %v589, %v588
        %v622 = vunpack.c.l.b16 %v542
        %v623 = vunpack.c.l.b16 %v543
        %v624 = vunpack.c.l.b16 %v544
        %v625 = vunpack.c.l.b16 %v545
        %v626 = vunpack.c.l.b16 %v546
        %v627 = vunpack.c.l.b16 %v547
        %v628 = vunpack.c.l.b16 %v548
        %v629 = vunpack.c.l.b16 %v549
        %v630 = vunpack.c.l.b16 %v550
        %v631 = vunpack.c.l.b16 %v551
        %v632 = vunpack.c.l.b16 %v552
        %v633 = vunpack.c.l.b16 %v553
        %v634 = vunpack.c.l.b16 %v554
        %v635 = vunpack.c.l.b16 %v555
        %v636 = vunpack.c.l.b16 %v556
        %v637 = vunpack.c.l.b16 %v557
        %v638 = vpack.c.b16 %v623, %v622
        %v639 = vpack.c.b16 %v625, %v624
        %v640 = vpack.c.b16 %v627, %v626
        %v641 = vpack.c.b16 %v629, %v628
        %v642 = vpack.c.b16 %v631, %v630
        %v643 = vpack.c.b16 %v633, %v632
        %v644 = vpack.c.b16 %v635, %v634
        %v645 = vpack.c.b16 %v637, %v636
        %654 = vmatpush.bf16.msra.mxu0 %v645
        %655 = vmatpush.bf16.msra.mxu0 %v644
        %656 = vmatpush.bf16.msra.mxu0 %v643
        %657 = vmatpush.bf16.msra.mxu0 %v642
        %658 = vmatpush.bf16.msra.mxu0 %v641
        %659 = vmatpush.bf16.msra.mxu0 %v640
        %660 = vmatpush.bf16.msra.mxu0 %v639
        %661 = vmatpush.bf16.msra.mxu0 %v638
        %662 = vmatmul.bf16.gmra.mxu0 %v590
        %v663 = vpop.f32.mrf.mxu0
        %v664 = vadd.f32 0.0, %v663
        %v665 = vpop.f32.mrf.mxu0
        %v666 = vadd.f32 0.0, %v665
        %667 = vmatmul.bf16.gmra.mxu0 %v591
        %v668 = vpop.f32.mrf.mxu0
        %v669 = vadd.f32 0.0, %v668
        %v670 = vpop.f32.mrf.mxu0
        %v671 = vadd.f32 0.0, %v670
        %672 = vmatmul.bf16.gmra.mxu0 %v592
        %v673 = vpop.f32.mrf.mxu0
        %v674 = vadd.f32 0.0, %v673
        %v675 = vpop.f32.mrf.mxu0
        %v676 = vadd.f32 0.0, %v675
        %677 = vmatmul.bf16.gmra.mxu0 %v593
        %v678 = vpop.f32.mrf.mxu0
        %v679 = vadd.f32 0.0, %v678
        %v680 = vpop.f32.mrf.mxu0
        %v681 = vadd.f32 0.0, %v680
        %682 = vmatmul.bf16.gmra.mxu0 %v594
        %v683 = vpop.f32.mrf.mxu0
        %v684 = vadd.f32 0.0, %v683
        %v685 = vpop.f32.mrf.mxu0
        %v686 = vadd.f32 0.0, %v685
        %687 = vmatmul.bf16.gmra.mxu0 %v595
        %v688 = vpop.f32.mrf.mxu0
        %v689 = vadd.f32 0.0, %v688
        %v690 = vpop.f32.mrf.mxu0
        %v691 = vadd.f32 0.0, %v690
        %692 = vmatmul.bf16.gmra.mxu0 %v596
        %v693 = vpop.f32.mrf.mxu0
        %v694 = vadd.f32 0.0, %v693
        %v695 = vpop.f32.mrf.mxu0
        %v696 = vadd.f32 0.0, %v695
        %697 = vmatmul.bf16.gmra.mxu0 %v597
        %v698 = vpop.f32.mrf.mxu0
        %v699 = vadd.f32 0.0, %v698
        %v700 = vpop.f32.mrf.mxu0
        %v701 = vadd.f32 0.0, %v700
        %702 = vdwg.mxu0
        %v703 = vadd.f32 %v506, %v664
        %v704 = vadd.f32 %v507, %v666
        %v705 = vadd.f32 %v508, %v669
        %v706 = vadd.f32 %v509, %v671
        %v707 = vadd.f32 %v510, %v674
        %v708 = vadd.f32 %v511, %v676
        %v709 = vadd.f32 %v512, %v679
        %v710 = vadd.f32 %v513, %v681
        %v711 = vadd.f32 %v514, %v684
        %v712 = vadd.f32 %v515, %v686
        %v713 = vadd.f32 %v516, %v689
        %v714 = vadd.f32 %v517, %v691
        %v715 = vadd.f32 %v518, %v694
        %v716 = vadd.f32 %v519, %v696
        %v717 = vadd.f32 %v520, %v699
        %v718 = vadd.f32 %v521, %v701
        %719 = vst [vmem:[#allocation2] sm:$0xff] %v703
        %720 = vst [vmem:[#allocation2 + $0x8] sm:$0xff] %v704
        %721 = vst [vmem:[#allocation2 + $0x10] sm:$0xff] %v705
        %722 = vst [vmem:[#allocation2 + $0x18] sm:$0xff] %v706
        %723 = vst [vmem:[#allocation2 + $0x20] sm:$0xff] %v707
        %724 = vst [vmem:[#allocation2 + $0x28] sm:$0xff] %v708
        %725 = vst [vmem:[#allocation2 + $0x30] sm:$0xff] %v709
        %726 = vst [vmem:[#allocation2 + $0x38] sm:$0xff] %v710
        %727 = vst [vmem:[#allocation2 + $0x40] sm:$0xff] %v711
        %728 = vst [vmem:[#allocation2 + $0x48] sm:$0xff] %v712
        %729 = vst [vmem:[#allocation2 + $0x50] sm:$0xff] %v713
        %730 = vst [vmem:[#allocation2 + $0x58] sm:$0xff] %v714
        %731 = vst [vmem:[#allocation2 + $0x60] sm:$0xff] %v715
        %732 = vst [vmem:[#allocation2 + $0x68] sm:$0xff] %v716
        %733 = vst [vmem:[#allocation2 + $0x70] sm:$0xff] %v717
        %734 = vst [vmem:[#allocation2 + $0x78] sm:$0xff] %v718
        %p735 = scmp.eq.s32.totalorder %s21, 1
        // Predicated region
        $region86: #{gcn_forward.4} parent=76 // pred_check
          %p736 = pneg %p735
        $region87: #{gcn_forward.4} parent=76 // pred_check_branch
          %738 = sbr.rel (%p736) target = $region89
        $region88: #{gcn_forward.4} parent=76 // pred_region
          %v739 = vld [vmem:[#allocation2] sm:$0xff]
          %v740 = vld [vmem:[#allocation2 + $0x8] sm:$0xff]
          %v741 = vld [vmem:[#allocation2 + $0x10] sm:$0xff]
          %v742 = vld [vmem:[#allocation2 + $0x18] sm:$0xff]
          %v743 = vld [vmem:[#allocation2 + $0x20] sm:$0xff]
          %v744 = vld [vmem:[#allocation2 + $0x28] sm:$0xff]
          %v745 = vld [vmem:[#allocation2 + $0x30] sm:$0xff]
          %v746 = vld [vmem:[#allocation2 + $0x38] sm:$0xff]
          %v747 = vld [vmem:[#allocation2 + $0x40] sm:$0xff]
          %v748 = vld [vmem:[#allocation2 + $0x48] sm:$0xff]
          %v749 = vld [vmem:[#allocation2 + $0x50] sm:$0xff]
          %v750 = vld [vmem:[#allocation2 + $0x58] sm:$0xff]
          %v751 = vld [vmem:[#allocation2 + $0x60] sm:$0xff]
          %v752 = vld [vmem:[#allocation2 + $0x68] sm:$0xff]
          %v753 = vld [vmem:[#allocation2 + $0x70] sm:$0xff]
          %v754 = vld [vmem:[#allocation2 + $0x78] sm:$0xff]
          %v755 = vmax.f32 %v739, 0.0
          %v756 = vmax.f32 %v740, 0.0
          %v757 = vmax.f32 %v741, 0.0
          %v758 = vmax.f32 %v742, 0.0
          %v759 = vmax.f32 %v743, 0.0
          %v760 = vmax.f32 %v744, 0.0
          %v761 = vmax.f32 %v745, 0.0
          %v762 = vmax.f32 %v746, 0.0
          %v763 = vmax.f32 %v747, 0.0
          %v764 = vmax.f32 %v748, 0.0
          %v765 = vmax.f32 %v749, 0.0
          %v766 = vmax.f32 %v750, 0.0
          %v767 = vmax.f32 %v751, 0.0
          %v768 = vmax.f32 %v752, 0.0
          %v769 = vmax.f32 %v753, 0.0
          %v770 = vmax.f32 %v754, 0.0
          %v771 = vpack.c.bf16 %v756, %v755
          %v772 = vpack.c.bf16 %v758, %v757
          %v773 = vpack.c.bf16 %v760, %v759
          %v774 = vpack.c.bf16 %v762, %v761
          %v775 = vpack.c.bf16 %v764, %v763
          %v776 = vpack.c.bf16 %v766, %v765
          %v777 = vpack.c.bf16 %v768, %v767
          %v778 = vpack.c.bf16 %v770, %v769
          %v779 = vld [vmem:[%s4] sm:$0xf]
          %v780 = vld [vmem:[%s4 + $0x4] sm:$0xf]
          %v781 = vld [vmem:[%s4 + $0x8] sm:$0xf]
          %v782 = vld [vmem:[%s4 + $0xc] sm:$0xf]
          %v783 = vld [vmem:[%s4 + $0x10] sm:$0xf]
          %v784 = vld [vmem:[%s4 + $0x14] sm:$0xf]
          %v785 = vld [vmem:[%s4 + $0x18] sm:$0xf]
          %v786 = vld [vmem:[%s4 + $0x1c] sm:$0xf]
          %v787 = vld [vmem:[%s4 + $0x20] sm:$0xf]
          %v788 = vld [vmem:[%s4 + $0x24] sm:$0xf]
          %v789 = vld [vmem:[%s4 + $0x28] sm:$0xf]
          %v790 = vld [vmem:[%s4 + $0x2c] sm:$0xf]
          %v791 = vld [vmem:[%s4 + $0x30] sm:$0xf]
          %v792 = vld [vmem:[%s4 + $0x34] sm:$0xf]
          %v793 = vld [vmem:[%s4 + $0x38] sm:$0xf]
          %v794 = vld [vmem:[%s4 + $0x3c] sm:$0xf]
          %v811 = vunpack.c.l.b16 %v779
          %v812 = vunpack.c.l.b16 %v780
          %v813 = vunpack.c.l.b16 %v781
          %v814 = vunpack.c.l.b16 %v782
          %v815 = vunpack.c.l.b16 %v783
          %v816 = vunpack.c.l.b16 %v784
          %v817 = vunpack.c.l.b16 %v785
          %v818 = vunpack.c.l.b16 %v786
          %v819 = vunpack.c.l.b16 %v787
          %v820 = vunpack.c.l.b16 %v788
          %v821 = vunpack.c.l.b16 %v789
          %v822 = vunpack.c.l.b16 %v790
          %v823 = vunpack.c.l.b16 %v791
          %v824 = vunpack.c.l.b16 %v792
          %v825 = vunpack.c.l.b16 %v793
          %v826 = vunpack.c.l.b16 %v794
          %v827 = vpack.c.b16 %v812, %v811
          %v828 = vpack.c.b16 %v814, %v813
          %v829 = vpack.c.b16 %v816, %v815
          %v830 = vpack.c.b16 %v818, %v817
          %v831 = vpack.c.b16 %v820, %v819
          %v832 = vpack.c.b16 %v822, %v821
          %v833 = vpack.c.b16 %v824, %v823
          %v834 = vpack.c.b16 %v826, %v825
          %843 = vmatpush.bf16.msra.mxu0 %v834
          %844 = vmatpush.bf16.msra.mxu0 %v833
          %845 = vmatpush.bf16.msra.mxu0 %v832
          %846 = vmatpush.bf16.msra.mxu0 %v831
          %847 = vmatpush.bf16.msra.mxu0 %v830
          %848 = vmatpush.bf16.msra.mxu0 %v829
          %849 = vmatpush.bf16.msra.mxu0 %v828
          %850 = vmatpush.bf16.msra.mxu0 %v827
          %851 = vmatmul.bf16.gmra.mxu0 %v771
          %v852 = vpop.f32.mrf.mxu0
          %v853 = vadd.f32 0.0, %v852
          %v854 = vpop.f32.mrf.mxu0
          %v855 = vadd.f32 0.0, %v854
          %856 = vmatmul.bf16.gmra.mxu0 %v772
          %v857 = vpop.f32.mrf.mxu0
          %v858 = vadd.f32 0.0, %v857
          %v859 = vpop.f32.mrf.mxu0
          %v860 = vadd.f32 0.0, %v859
          %861 = vmatmul.bf16.gmra.mxu0 %v773
          %v862 = vpop.f32.mrf.mxu0
          %v863 = vadd.f32 0.0, %v862
          %v864 = vpop.f32.mrf.mxu0
          %v865 = vadd.f32 0.0, %v864
          %866 = vmatmul.bf16.gmra.mxu0 %v774
          %v867 = vpop.f32.mrf.mxu0
          %v868 = vadd.f32 0.0, %v867
          %v869 = vpop.f32.mrf.mxu0
          %v870 = vadd.f32 0.0, %v869
          %871 = vmatmul.bf16.gmra.mxu0 %v775
          %v872 = vpop.f32.mrf.mxu0
          %v873 = vadd.f32 0.0, %v872
          %v874 = vpop.f32.mrf.mxu0
          %v875 = vadd.f32 0.0, %v874
          %876 = vmatmul.bf16.gmra.mxu0 %v776
          %v877 = vpop.f32.mrf.mxu0
          %v878 = vadd.f32 0.0, %v877
          %v879 = vpop.f32.mrf.mxu0
          %v880 = vadd.f32 0.0, %v879
          %881 = vmatmul.bf16.gmra.mxu0 %v777
          %v882 = vpop.f32.mrf.mxu0
          %v883 = vadd.f32 0.0, %v882
          %v884 = vpop.f32.mrf.mxu0
          %v885 = vadd.f32 0.0, %v884
          %886 = vmatmul.bf16.gmra.mxu0 %v778
          %v887 = vpop.f32.mrf.mxu0
          %v888 = vadd.f32 0.0, %v887
          %v889 = vpop.f32.mrf.mxu0
          %v890 = vadd.f32 0.0, %v889
          %891 = vdwg.mxu0
          %v892 = vpack.c.bf16 %v853, %v853
          %v893 = vpack.c.bf16 %v855, %v855
          %v894 = vpack.c.bf16 %v858, %v858
          %v895 = vpack.c.bf16 %v860, %v860
          %v896 = vpack.c.bf16 %v863, %v863
          %v897 = vpack.c.bf16 %v865, %v865
          %v898 = vpack.c.bf16 %v868, %v868
          %v899 = vpack.c.bf16 %v870, %v870
          %v900 = vpack.c.bf16 %v873, %v873
          %v901 = vpack.c.bf16 %v875, %v875
          %v902 = vpack.c.bf16 %v878, %v878
          %v903 = vpack.c.bf16 %v880, %v880
          %v904 = vpack.c.bf16 %v883, %v883
          %v905 = vpack.c.bf16 %v885, %v885
          %v906 = vpack.c.bf16 %v888, %v888
          %v907 = vpack.c.bf16 %v890, %v890
          %908 = vst [vmem:[%s367] sm:$0xf] %v892
          %909 = vst [vmem:[%s367 + $0x4] sm:$0xf] %v893
          %910 = vst [vmem:[%s367 + $0x8] sm:$0xf] %v894
          %911 = vst [vmem:[%s367 + $0xc] sm:$0xf] %v895
          %912 = vst [vmem:[%s367 + $0x10] sm:$0xf] %v896
          %913 = vst [vmem:[%s367 + $0x14] sm:$0xf] %v897
          %914 = vst [vmem:[%s367 + $0x18] sm:$0xf] %v898
          %915 = vst [vmem:[%s367 + $0x1c] sm:$0xf] %v899
          %916 = vst [vmem:[%s367 + $0x20] sm:$0xf] %v900
          %917 = vst [vmem:[%s367 + $0x24] sm:$0xf] %v901
          %918 = vst [vmem:[%s367 + $0x28] sm:$0xf] %v902
          %919 = vst [vmem:[%s367 + $0x2c] sm:$0xf] %v903
          %920 = vst [vmem:[%s367 + $0x30] sm:$0xf] %v904
          %921 = vst [vmem:[%s367 + $0x34] sm:$0xf] %v905
          %922 = vst [vmem:[%s367 + $0x38] sm:$0xf] %v906
          %923 = vst [vmem:[%s367 + $0x3c] sm:$0xf] %v907
        $region89: #{gcn_forward.4} parent=76 // pred_fallthru
          _
        %s924 = smul.u32 16, %s20
        %p925 = scmp.lt.s32.totalorder %s924, 31
        %s926 = scalar_select %p925, %s924, 31
        %s927 = smul.addr %s926, 4
        %s928 = scalar_lea.vmem %s5, %s927
        // Predicated region
        $region90: #{gcn_forward.4} parent=76 // pred_check
          %p929 = pneg %p163
        $region91: #{gcn_forward.4} parent=76 // pred_check_branch
          %931 = sbr.rel (%p929) target = $region93
        $region92: #{gcn_forward.4} parent=76 // pred_region
          %s932 = smul.u32 16, %s20
        $region93: #{gcn_forward.4} parent=76 // pred_fallthru
          _
      $region77: #{gcn_forward.4} parent=5 // pred_fallthru
        _
      %p933 = scmp.le.s32.totalorder 2, %s11
      // Predicated region
      $region94: #{gcn_forward.4} parent=5 // pred_check
        %p934 = pneg %p933
      $region95: #{gcn_forward.4} parent=5 // pred_check_branch
        %936 = sbr.rel (%p934) target = $region97
      $region96: #{gcn_forward.4} parent=5 // pred_region
        %s937 = ssub.s32 %s11, 2
        // Predicated region
        $region98: #{gcn_forward.4} parent=96 // pred_check
          %p938 = pneg %p169
        $region99: #{gcn_forward.4} parent=96 // pred_check_branch
          %940 = sbr.rel (%p938) target = $region101
        $region100: #{gcn_forward.4} parent=96 // pred_region
          %s941 = smul.u32 16, %s22
          %p942 = scmp.lt.s32.totalorder %s941, 31
          %s943 = scalar_select %p942, %s941, 31
          %s944 = smul.addr %s943, 4
          %s945 = scalar_lea.vmem %s5, %s944
        $region101: #{gcn_forward.4} parent=96 // pred_fallthru
          _
      $region97: #{gcn_forward.4} parent=5 // pred_fallthru
        _
    $region6: #{gcn_forward.4} parent=1 // loop_footer
      %s15 = sadd.s32 1, %s11
    $region7: #{gcn_forward.4} parent=1 // loop_footer_branch
      %10 = sbr.rel target = $region3
    $region8: #{gcn_forward.4} parent=1 // loop_exit
      _

</llo_original>
